<compile_context>
chip_gen: v6e
topology: v6e:2x2x1
jax: 0.10.0
libtpu: 0.0.40
codegen_flags: <defaults>
</compile_context>

<pallas_src>
import jax
import jax.numpy as jnp
from jax.experimental import pallas as pl
from jax.experimental.pallas import tpu as pltpu

_LANE = 128


def _round_up(v, m):
    return (v + m - 1) // m * m


def _cdiv(a, b):
    return -(-a // b)


def _vmem_caps():
    """Returns (python_budget_bytes, compiler_vmem_limit_bytes), generation-aware."""
    cap = 64 * 1024 * 1024  # conservative fallback (v7x per-TC VMEM)
    try:
        cap = int(getattr(pltpu.get_tpu_info(), "vmem_capacity_bytes", cap))
    except Exception:
        pass
    budget = min(int(cap * 0.75), 100 * 1024 * 1024)
    limit = min(int(cap * 0.85), 112 * 1024 * 1024)
    return budget, max(limit, budget)


def _vmem_bytes(blk, dim_p, tk, xbytes, cbytes, obytes):
    x_buf = 2 * blk * dim_p * xbytes           # x row tile (double-buffered)
    o_buf = 2 * blk * dim_p * obytes           # output tile (double-buffered)
    acc = blk * dim_p * 4                      # f32 accumulator scratch (single buffer)
    w_buf = 2 * (2 * dim_p * tk) * cbytes      # W1/W2 k-slices (double-buffered)
    b_buf = 2 * (tk + dim_p) * 4               # biases (f32)
    h_tmp = blk * tk * (4 + cbytes)            # f32 hidden temp + its compute-dtype cast
    return x_buf + o_buf + acc + w_buf + b_buf + h_tmp


def _ffn_kernel(x_ref, w1_ref, b1_ref, w2_ref, b2_ref, o_ref, acc_ref):
    k = pl.program_id(1)

    @pl.when(k == 0)
    def _():
        acc_ref[...] = jnp.zeros_like(acc_ref)

    x = x_ref[...].astype(w1_ref.dtype)        # in-kernel cast; hidden under the MXU
    h = jnp.dot(x, w1_ref[...], preferred_element_type=jnp.float32)
    h = h + b1_ref[...]                        # bias in f32
    h = h * jax.nn.sigmoid(h)                  # SiLU in f32 (EUP)
    # Dropout(p=0.0) is the identity -> omitted.
    acc_ref[...] += jnp.dot(h.astype(w2_ref.dtype), w2_ref[...],
                            preferred_element_type=jnp.float32)

    @pl.when(k == pl.num_programs(1) - 1)
    def _():
        o_ref[...] = (acc_ref[...] + b2_ref[...]).astype(o_ref.dtype)


def make_feed_forward_params(w1, b1, w2, b2, *, compute_dtype=jnp.bfloat16, max_tk=None):
    """Pad + cast the weights ONCE (hoisted out of the per-call hot path).

    w1: (dim, hidden), b1: (hidden,), w2: (hidden, dim), b2: (dim,) — Linear weights laid
    out for `x @ w` (i.e. the transpose of PyTorch's nn.Linear.weight).
    compute_dtype: MXU input dtype (bf16 by default; accumulation is always f32)."""
    dim, hidden = w1.shape
    assert w2.shape == (hidden, dim) and b1.shape == (hidden,) and b2.shape == (dim,)

    cbytes = jnp.dtype(compute_dtype).itemsize
    budget, _ = _vmem_caps()

    dim_p = _round_up(dim, _LANE)
    # K tile over hidden: start fully resident; shrink until the two streamed
    # (double-buffered) weight k-slices use at most ~half the VMEM budget.
    tk = _round_up(hidden, _LANE)
    if max_tk is not None:
        tk = min(tk, _round_up(max_tk, _LANE))
    while tk > _LANE and 2 * (2 * dim_p * tk) * cbytes > budget // 2:
        tk = max(_LANE, _round_up(tk // 2, _LANE))
    hidden_p = _round_up(hidden, tk)

    # Zero padding is exact through both GEMMs (padded rows/cols contribute nothing).
    w1_p = jnp.pad(w1, ((0, dim_p - dim), (0, hidden_p - hidden))).astype(compute_dtype)
    w2_p = jnp.pad(w2, ((0, hidden_p - hidden), (0, dim_p - dim))).astype(compute_dtype)
    b1_p = jnp.pad(b1, (0, hidden_p - hidden)).reshape(1, hidden_p).astype(jnp.float32)
    b2_p = jnp.pad(b2, (0, dim_p - dim)).reshape(1, dim_p).astype(jnp.float32)

    return dict(w1=w1_p, b1=b1_p, w2=w2_p, b2=b2_p,
                dim=dim, hidden=hidden, dim_p=dim_p, hidden_p=hidden_p, tk=tk)


def feed_forward(x, params, *, blk_rows=256):
    """Apply FeedForward to x of shape (..., dim). Returns the same shape/dtype as x."""
    dim, dim_p = params["dim"], params["dim_p"]
    hidden_p, tk = params["hidden_p"], params["tk"]
    w1_p, b1_p, w2_p, b2_p = params["w1"], params["b1"], params["w2"], params["b2"]

    orig_shape = x.shape
    out_dtype = x.dtype
    x2d = x.reshape(-1, dim)
    n = x2d.shape[0]

    xbytes = jnp.dtype(x.dtype).itemsize
    cbytes = jnp.dtype(w1_p.dtype).itemsize
    obytes = jnp.dtype(out_dtype).itemsize
    budget, vmem_limit = _vmem_caps()

    # Row tile: multiple of 128, never shrunk below 128 (shed VMEM via tk, not M).
    # Tiny inputs get a single small (16-rounded) tile to avoid wasteful row padding.
    n16 = _round_up(max(n, 1), 16)
    if n16 >= 2 * 128:
        blk = max(128, (min(blk_rows, n16) // 128) * 128)
        if _cdiv(n16, blk) < 2:
            # v7x megacore: give both TensorCores at least one row tile.
            blk = max(128, _round_up(_cdiv(n16, 2), 128))
        while blk > 128 and _vmem_bytes(blk, dim_p, tk, xbytes, cbytes, obytes) > budget:
            blk = max(128, ((blk // 2) // 128) * 128)
    else:
        blk = n16
    n_p = _round_up(n, blk)

    # Zero-pad rows / feature dim (exact; sliced away below).
    if (n_p, dim_p) != (n, dim):
        x2d = jnp.pad(x2d, ((0, n_p - n), (0, dim_p - dim)))

    grid = (n_p // blk, hidden_p // tk)
    n_row_tiles = grid[0]

    cost = pl.CostEstimate(
        flops=4 * n_p * dim_p * hidden_p,               # two GEMMs: 2*M*K*N each
        transcendentals=n_p * hidden_p,                 # one exp per sigmoid
        bytes_accessed=(n_p * dim_p * xbytes
                        + n_row_tiles * 2 * dim_p * hidden_p * cbytes
                        + (hidden_p + dim_p) * 4
                        + n_p * dim_p * obytes),
    )

    out = pl.pallas_call(
        _ffn_kernel,
        out_shape=jax.ShapeDtypeStruct((n_p, dim_p), out_dtype),
        grid_spec=pltpu.PrefetchScalarGridSpec(
            num_scalar_prefetch=0,
            grid=grid,
            in_specs=[
                pl.BlockSpec((blk, dim_p), lambda i, k: (i, 0)),     # x row tile
                pl.BlockSpec((dim_p, tk), lambda i, k: (0, k)),      # W1 k-slice (streamed)
                pl.BlockSpec((1, tk), lambda i, k: (0, k)),          # b1 k-slice
                pl.BlockSpec((tk, dim_p), lambda i, k: (k, 0)),      # W2 k-slice (streamed)
                pl.BlockSpec((1, dim_p), lambda i, k: (0, 0)),       # b2 (resident)
            ],
            out_specs=pl.BlockSpec((blk, dim_p), lambda i, k: (i, 0)),
            scratch_shapes=[pltpu.VMEM((blk, dim_p), jnp.float32)],  # f32 accumulator
        ),
        compiler_params=pltpu.CompilerParams(
            dimension_semantics=("parallel", "arbitrary"),  # rows shard across v7x's 2 TCs
            vmem_limit_bytes=vmem_limit,                    # consistent with Python budget
        ),
        cost_estimate=cost,
    )(x2d, w1_p, b1_p, w2_p, b2_p)

    return out[:n, :dim].reshape(orig_shape)


def _reference_f32(x, w1, b1, w2, b2):
    h = x @ w1 + b1
    h = h * jax.nn.sigmoid(h)
    return h @ w2 + b2


def _reference_matched(x, w1, b1, w2, b2, compute_dtype=jnp.bfloat16):
    # Same numerics as the kernel: bf16 MXU inputs, f32 accumulation / bias / SiLU.
    orig = x.shape
    x2 = x.reshape(-1, x.shape[-1]).astype(compute_dtype)
    h = jnp.dot(x2, w1.astype(compute_dtype), preferred_element_type=jnp.float32) + b1
    h = h * jax.nn.sigmoid(h)
    y = jnp.dot(h.astype(compute_dtype), w2.astype(compute_dtype),
                preferred_element_type=jnp.float32) + b2
    return y.reshape(orig).astype(x.dtype)


if __name__ == "__main__":
    key = jax.random.PRNGKey(0)

    def make_raw_params(k, dim, hidden):
        kw1, kb1, kw2, kb2 = jax.random.split(k, 4)
        w1 = jax.random.normal(kw1, (dim, hidden), dtype=jnp.float32) * 0.02
        b1 = jax.random.normal(kb1, (hidden,), dtype=jnp.float32) * 0.02
        w2 = jax.random.normal(kw2, (hidden, dim), dtype=jnp.float32) * 0.02
        b2 = jax.random.normal(kb2, (dim,), dtype=jnp.float32) * 0.02
        return w1, b1, w2, b2

    def check(name, x, w1, b1, w2, b2, **prep_kwargs):
        params = make_feed_forward_params(w1, b1, w2, b2, **prep_kwargs)
        out = jax.block_until_ready(feed_forward(x, params))
        assert out.shape == x.shape and out.dtype == x.dtype
        assert jnp.allclose(out, _reference_matched(x, w1, b1, w2, b2),
                            atol=1e-3, rtol=1e-2), \
            f"mismatch vs matched-precision reference ({name})"
        assert jnp.allclose(out, _reference_f32(x, w1, b1, w2, b2),
                            atol=1e-2, rtol=1e-1), \
            f"mismatch vs f32 reference ({name})"

    k1, k2, k3, kx1, kx2, kx3 = jax.random.split(key, 6)

    # Case 1: lane-aligned shapes; 512 rows -> 2 row tiles of 256 (megacore-friendly grid).
    x = jax.random.normal(kx1, (8, 64, 128), dtype=jnp.float32)
    check("case 1", x, *make_raw_params(k1, 128, 256))

    # Case 2: small, unaligned shapes — exercises row + feature zero-padding path.
    x = jax.random.normal(kx2, (2, 7, 32), dtype=jnp.float32)
    check("case 2", x, *make_raw_params(k2, 32, 48))

    # Case 3: force a multi-step hidden (K) axis -> exercises the f32 accumulator
    # init/finalize path and multiple row tiles with row/feature padding.
    x = jax.random.normal(kx3, (2, 135, 64), dtype=jnp.float32)
    check("case 3", x, *make_raw_params(k3, 64, 320), max_tk=128)

    print("KERNEL_OK")
</pallas_src>

<mosaic_0001>
module attributes {stable_mosaic.version = 11 : i64} {
  func.func @_ffn_kernel(%arg0: i32, %arg1: i32, %arg2: memref<256x128xf32, #tpu.memory_space<vmem>>, %arg3: memref<128x256xbf16, #tpu.memory_space<vmem>>, %arg4: memref<1x256xf32, #tpu.memory_space<vmem>>, %arg5: memref<256x128xbf16, #tpu.memory_space<vmem>>, %arg6: memref<1x128xf32, #tpu.memory_space<vmem>>, %arg7: memref<256x128xf32, #tpu.memory_space<vmem>>, %arg8: memref<256x128xf32, #tpu.memory_space<vmem>>) attributes {dimension_semantics = [#tpu.dimension_semantics<parallel>, #tpu.dimension_semantics<arbitrary>], iteration_bounds = array<i64: 2, 1>, scalar_prefetch = 0 : i64, scratch_operands = 1 : i64, tpu.core_type = #tpu.core_type<tc>, window_params = [{transform_indices = @transform_0, window_bounds = array<i64: 256, 128>}, {transform_indices = @transform_1, window_bounds = array<i64: 128, 256>}, {transform_indices = @transform_2, window_bounds = array<i64: 1, 256>}, {transform_indices = @transform_3, window_bounds = array<i64: 256, 128>}, {pipeline_mode = #tpu.pipeline_mode<synchronous>, transform_indices = @transform_4, window_bounds = array<i64: 1, 128>}, {transform_indices = @transform_5, window_bounds = array<i64: 256, 128>}]} {
    %c0_i32 = arith.constant 0 : i32
    %0 = arith.cmpi eq, %arg1, %c0_i32 : i32
    %1 = arith.extui %0 : i1 to i32
    %c0_i32_0 = arith.constant 0 : i32
    %2 = arith.cmpi ne, %1, %c0_i32_0 : i32
    scf.if %2 {
      %cst_16 = arith.constant 0.000000e+00 : f32
      %25 = vector.broadcast %cst_16 : f32 to vector<256x128xf32>
      %c0_17 = arith.constant 0 : index
      %c0_18 = arith.constant 0 : index
      %26 = vector.load %arg8[%c0_17, %c0_18] : memref<256x128xf32, #tpu.memory_space<vmem>>, vector<256x128xf32>
      tpu.vector_store %arg8[%c0_17, %c0_18], %25 {strides = array<i32>} : memref<256x128xf32, #tpu.memory_space<vmem>>, vector<256x128xf32>,
    } else {
    }
    %c0 = arith.constant 0 : index
    %c0_1 = arith.constant 0 : index
    %3 = vector.load %arg2[%c0, %c0_1] : memref<256x128xf32, #tpu.memory_space<vmem>>, vector<256x128xf32>
    %4 = arith.truncf %3 : vector<256x128xf32> to vector<256x128xbf16>
    %c0_2 = arith.constant 0 : index
    %c0_3 = arith.constant 0 : index
    %5 = vector.load %arg3[%c0_2, %c0_3] : memref<128x256xbf16, #tpu.memory_space<vmem>>, vector<128x256xbf16>
    %cst = arith.constant dense<0.000000e+00> : vector<256x256xf32>
    %6 = tpu.matmul %4, %5, %cst {dimension_numbers = #tpu.dot_dimension_numbers<[1], [0], [0], [1], [0, 0, 1, 1], [], []>} : vector<256x128xbf16>, vector<128x256xbf16>, vector<256x256xf32> -> vector<256x256xf32>
    %c0_4 = arith.constant 0 : index
    %c0_5 = arith.constant 0 : index
    %7 = vector.load %arg4[%c0_4, %c0_5] : memref<1x256xf32, #tpu.memory_space<vmem>>, vector<1x256xf32>
    %8 = vector.broadcast %7 : vector<1x256xf32> to vector<256x256xf32>
    %9 = arith.addf %6, %8 : vector<256x256xf32>
    %10 = arith.negf %9 : vector<256x256xf32>
    %11 = math.exp %10 : vector<256x256xf32>
    %cst_6 = arith.constant 1.000000e+00 : f32
    %12 = vector.broadcast %cst_6 : f32 to vector<256x256xf32>
    %13 = arith.addf %12, %11 : vector<256x256xf32>
    %14 = arith.divf %12, %13 : vector<256x256xf32>
    %15 = arith.mulf %9, %14 : vector<256x256xf32>
    %c0_7 = arith.constant 0 : index
    %c0_8 = arith.constant 0 : index
    %16 = vector.load %arg8[%c0_7, %c0_8] : memref<256x128xf32, #tpu.memory_space<vmem>>, vector<256x128xf32>
    %17 = arith.truncf %15 : vector<256x256xf32> to vector<256x256xbf16>
    %c0_9 = arith.constant 0 : index
    %c0_10 = arith.constant 0 : index
    %18 = vector.load %arg5[%c0_9, %c0_10] : memref<256x128xbf16, #tpu.memory_space<vmem>>, vector<256x128xbf16>
    %cst_11 = arith.constant dense<0.000000e+00> : vector<256x128xf32>
    %19 = tpu.matmul %17, %18, %cst_11 {dimension_numbers = #tpu.dot_dimension_numbers<[1], [0], [0], [1], [0, 0, 1, 1], [], []>} : vector<256x256xbf16>, vector<256x128xbf16>, vector<256x128xf32> -> vector<256x128xf32>
    %20 = arith.addf %16, %19 : vector<256x128xf32>
    %c0_12 = arith.constant 0 : index
    %c0_13 = arith.constant 0 : index
    %21 = vector.load %arg8[%c0_12, %c0_13] : memref<256x128xf32, #tpu.memory_space<vmem>>, vector<256x128xf32>
    tpu.vector_store %arg8[%c0_12, %c0_13], %20 {strides = array<i32>} : memref<256x128xf32, #tpu.memory_space<vmem>>, vector<256x128xf32>,
    %c0_i32_14 = arith.constant 0 : i32
    %22 = arith.cmpi eq, %arg1, %c0_i32_14 : i32
    %23 = arith.extui %22 : i1 to i32
    %c0_i32_15 = arith.constant 0 : i32
    %24 = arith.cmpi ne, %23, %c0_i32_15 : i32
    scf.if %24 {
      %c0_16 = arith.constant 0 : index
      %c0_17 = arith.constant 0 : index
      %25 = vector.load %arg8[%c0_16, %c0_17] : memref<256x128xf32, #tpu.memory_space<vmem>>, vector<256x128xf32>
      %c0_18 = arith.constant 0 : index
      %c0_19 = arith.constant 0 : index
      %26 = vector.load %arg6[%c0_18, %c0_19] : memref<1x128xf32, #tpu.memory_space<vmem>>, vector<1x128xf32>
      %27 = vector.broadcast %26 : vector<1x128xf32> to vector<256x128xf32>
      %28 = arith.addf %25, %27 : vector<256x128xf32>
      %c0_20 = arith.constant 0 : index
      %c0_21 = arith.constant 0 : index
      %29 = vector.load %arg7[%c0_20, %c0_21] : memref<256x128xf32, #tpu.memory_space<vmem>>, vector<256x128xf32>
      tpu.vector_store %arg7[%c0_20, %c0_21], %28 {strides = array<i32>} : memref<256x128xf32, #tpu.memory_space<vmem>>, vector<256x128xf32>,
    } else {
    }
    return
  }
  func.func @transform_0(%arg0: i32, %arg1: i32) -> (i32, i32) {
    %c0_i32 = arith.constant 0 : i32
    %c0_i32_0 = arith.constant 0 : i32
    return %arg0, %c0_i32 : i32, i32
  }
  func.func @transform_1(%arg0: i32, %arg1: i32) -> (i32, i32) {
    %c0_i32 = arith.constant 0 : i32
    %c0_i32_0 = arith.constant 0 : i32
    return %c0_i32, %arg1 : i32, i32
  }
  func.func @transform_2(%arg0: i32, %arg1: i32) -> (i32, i32) {
    %c0_i32 = arith.constant 0 : i32
    %c0_i32_0 = arith.constant 0 : i32
    return %c0_i32, %arg1 : i32, i32
  }
  func.func @transform_3(%arg0: i32, %arg1: i32) -> (i32, i32) {
    %c0_i32 = arith.constant 0 : i32
    %c0_i32_0 = arith.constant 0 : i32
    return %arg1, %c0_i32 : i32, i32
  }
  func.func @transform_4(%arg0: i32, %arg1: i32) -> (i32, i32) {
    %c0_i32 = arith.constant 0 : i32
    %c0_i32_0 = arith.constant 0 : i32
    %c0_i32_1 = arith.constant 0 : i32
    return %c0_i32, %c0_i32_0 : i32, i32
  }
  func.func @transform_5(%arg0: i32, %arg1: i32) -> (i32, i32) {
    %c0_i32 = arith.constant 0 : i32
    %c0_i32_0 = arith.constant 0 : i32
    return %arg0, %c0_i32 : i32, i32
  }
}

</mosaic_0001>

<llo_original>
// kernel: tpu_custom_call.1
$region0: #{tpu_custom_call.1}
  #allocation0 [shape = 'u32[]', space=smem, size = 0x4, offset = 0x4, fixed_abs, tag = 'smem constant byte address 0x4 - core index']
  #allocation1 [shape = 'u32[144,128]{1,0:T(1,128)}', space=vmem, size = 0x12000, scoped, tag = 'internal scratch']
  #allocation2 [shape = 'f32[256,128]{1,0:T(8,128)}', space=vmem, size = 0x20000, scoped, tag = 'scratch operand']
  %s0 = inlined_call_operand.hbm [shape: f32[512,128], index: 0, kind: input, shape index: {}]
  %s1 = inlined_call_operand.hbm [shape: bf16[128,256], index: 1, kind: input, shape index: {}]
  %s2 = inlined_call_operand.vmem [shape: f32[1,256], index: 2, kind: input, shape index: {}]
  %s3 = inlined_call_operand.hbm [shape: bf16[256,128], index: 3, kind: input, shape index: {}]
  %s4 = inlined_call_operand.vmem [shape: f32[1,128], index: 4, kind: input, shape index: {}]
  %s5 = inlined_call_operand.hbm [shape: f32[512,128], index: 5, kind: output, shape index: {}]
  %s6 = sld [smem:[#allocation0]]
  $region73: #{tpu_custom_call.1} parent=0
    _
  %s8 = ssub.s32 1, %s6
  %s9 = scalar_select 0, %s8, %s6
  $region1: #{tpu_custom_call.1} parent=0
    #allocation3 [shape = 'u8[262144]{0}', space=vmem, size = 0x40000, scoped, tag = 'input window, operand 0']
    #allocation4 [shape = 's32[2]{0}', space=sflag, size = 0x8, scoped, tag = 'scoped memory for tpu_custom_call.1']
    #allocation5 [shape = 's32[2]{0}', space=sflag, size = 0x8, scoped, tag = 'scoped memory for tpu_custom_call.1']
    #allocation6 [shape = 'u8[65536]{0}', space=vmem, size = 0x10000, scoped, tag = 'input window, operand 1, single buffered']
    #allocation7 [shape = 's32[1]{0}', space=sflag, size = 0x4, scoped, tag = 'scoped memory for tpu_custom_call.1']
    #allocation8 [shape = 'u8[65536]{0}', space=vmem, size = 0x10000, scoped, tag = 'input window, operand 3, single buffered']
    #allocation9 [shape = 'u8[262144]{0}', space=vmem, size = 0x40000, scoped, tag = 'output window, operand 0']
    %10 = vsyncpa [#allocation4], 0
    %s11 = scalar_lea.sflag [#allocation4], 1
    %12 = vsyncpa %s11, 0
    %13 = vsyncpa [#allocation7], 0
    %14 = vsyncpa [#allocation5], 0
    %s15 = scalar_lea.sflag [#allocation5], 1
    %16 = vsyncpa %s15, 0
    loop: start=0, step=1, limit=4
    $region2: #{tpu_custom_call.1} parent=1 // loop_pre_header
      _
    $region3: #{tpu_custom_call.1} parent=1 // loop_header
      %s18 = sphi 0, %s22
      %p19 = scmp.ge.s32.totalorder %s18, 4
      %s25 = sphi 0, %s37
      %s26 = sphi 0, %s33
      %s27 = sphi 0, %s25
      %s28 = sphi 0, %s26
      %s29 = sphi 0, %s27
      %s30 = sphi 0, %s28
      %s40 = sphi 0, %s42
      %s43 = sphi 0, %s40
      %s44 = sphi 0, %s43
      %s60 = sphi 0, %s44
      %s66 = sphi 0, %s68
      %s69 = sphi 0, %s66
      %s70 = sphi 0, %s69
      %s86 = sphi 0, %s70
      %s92 = sphi 0, %s94
      %s95 = sphi 0, %s92
      %s96 = sphi 0, %s95
      %s112 = sphi 0, %s96
      %s118 = sphi 0, %s120
      %s121 = sphi 0, %s118
      %s122 = sphi 0, %s121
      %s138 = sphi 0, %s122
      %s142 = sphi 0, %s142
      %s144 = sphi 0, %s142
      %s145 = sphi 0, %s144
      %s159 = sphi 0, %s145
      %s165 = sphi 0, %s167
      %s168 = sphi 0, %s165
      %s169 = sphi 0, %s168
      %s185 = sphi 0, %s169
    $region4: #{tpu_custom_call.1} parent=1 // loop_header_branch
      %21 = sbr.rel (%p19) target = $region8
    $region5: #{tpu_custom_call.1} parent=1 // loop_body
      %s23 = ssub.s32 %s18, 1
      %s24 = ssub.s32 %s18, 2
      %s31 = sadd.s32 1, %s26
      %p32 = scmp.ge.s32.totalorder %s31, 1
      %s33 = scalar_select %p32, 0, %s31
      %s34 = sadd.s32 1, %s25
      %s35 = scalar_select %p32, %s34, %s25
      %p36 = scmp.ge.s32.totalorder %s35, 2
      %s37 = scalar_select %p36, 0, %s35
      %s38 = ssub.s32 %s25, %s37
      %p39 = scmp.eq.s32.totalorder %s38, 0
      %s41 = sadd.s32 %s40, 1
      %s42 = scalar_select %p39, %s40, %s41
      %p45 = pneg %p39
      %p46 = scmp.eq.s32.totalorder %s18, 1
      %p47 = por %p45, %p46
      %p48 = scmp.ne.s32.totalorder %s40, %s43
      %p49 = scmp.eq.s32.totalorder %s18, 0
      %p50 = por %p48, %p49
      %p51 = scmp.ne.s32.totalorder %s40, %s43
      %p52 = scmp.eq.s32.totalorder %s23, 1
      %p53 = por %p51, %p52
      %p54 = scmp.ne.s32.totalorder %s43, %s44
      %p55 = scmp.eq.s32.totalorder %s23, 0
      %p56 = por %p54, %p55
      %p57 = scmp.ne.s32.totalorder %s43, %s44
      %p58 = scmp.eq.s32.totalorder %s24, 1
      %p59 = por %p57, %p58
      %p61 = scmp.ne.s32.totalorder %s44, %s60
      %p62 = scmp.eq.s32.totalorder %s24, 0
      %p63 = por %p61, %p62
      %s64 = ssub.s32 %s26, %s33
      %p65 = scmp.eq.s32.totalorder %s64, 0
      %s67 = sadd.s32 %s66, 1
      %s68 = scalar_select %p65, %s66, %s67
      %p71 = pneg %p65
      %p72 = scmp.eq.s32.totalorder %s18, 1
      %p73 = por %p71, %p72
      %p74 = scmp.ne.s32.totalorder %s66, %s69
      %p75 = scmp.eq.s32.totalorder %s18, 0
      %p76 = por %p74, %p75
      %p77 = scmp.ne.s32.totalorder %s66, %s69
      %p78 = scmp.eq.s32.totalorder %s23, 1
      %p79 = por %p77, %p78
      %p80 = scmp.ne.s32.totalorder %s69, %s70
      %p81 = scmp.eq.s32.totalorder %s23, 0
      %p82 = por %p80, %p81
      %p83 = scmp.ne.s32.totalorder %s69, %s70
      %p84 = scmp.eq.s32.totalorder %s24, 1
      %p85 = por %p83, %p84
      %p87 = scmp.ne.s32.totalorder %s70, %s86
      %p88 = scmp.eq.s32.totalorder %s24, 0
      %p89 = por %p87, %p88
      %s90 = ssub.s32 %s26, %s33
      %p91 = scmp.eq.s32.totalorder %s90, 0
      %s93 = sadd.s32 %s92, 1
      %s94 = scalar_select %p91, %s92, %s93
      %p97 = pneg %p91
      %p98 = scmp.eq.s32.totalorder %s18, 1
      %p99 = por %p97, %p98
      %p100 = scmp.ne.s32.totalorder %s92, %s95
      %p101 = scmp.eq.s32.totalorder %s18, 0
      %p102 = por %p100, %p101
      %p103 = scmp.ne.s32.totalorder %s92, %s95
      %p104 = scmp.eq.s32.totalorder %s23, 1
      %p105 = por %p103, %p104
      %p106 = scmp.ne.s32.totalorder %s95, %s96
      %p107 = scmp.eq.s32.totalorder %s23, 0
      %p108 = por %p106, %p107
      %p109 = scmp.ne.s32.totalorder %s95, %s96
      %p110 = scmp.eq.s32.totalorder %s24, 1
      %p111 = por %p109, %p110
      %p113 = scmp.ne.s32.totalorder %s96, %s112
      %p114 = scmp.eq.s32.totalorder %s24, 0
      %p115 = por %p113, %p114
      %s116 = ssub.s32 %s26, %s33
      %p117 = scmp.eq.s32.totalorder %s116, 0
      %s119 = sadd.s32 %s118, 1
      %s120 = scalar_select %p117, %s118, %s119
      %p123 = pneg %p117
      %p124 = scmp.eq.s32.totalorder %s18, 1
      %p125 = por %p123, %p124
      %p126 = scmp.ne.s32.totalorder %s118, %s121
      %p127 = scmp.eq.s32.totalorder %s18, 0
      %p128 = por %p126, %p127
      %p129 = scmp.ne.s32.totalorder %s118, %s121
      %p130 = scmp.eq.s32.totalorder %s23, 1
      %p131 = por %p129, %p130
      %p132 = scmp.ne.s32.totalorder %s121, %s122
      %p133 = scmp.eq.s32.totalorder %s23, 0
      %p134 = por %p132, %p133
      %p135 = scmp.ne.s32.totalorder %s121, %s122
      %p136 = scmp.eq.s32.totalorder %s24, 1
      %p137 = por %p135, %p136
      %p139 = scmp.ne.s32.totalorder %s122, %s138
      %p140 = scmp.eq.s32.totalorder %s24, 0
      %p141 = por %p139, %p140
      %s143 = sadd.s32 %s142, 1
      %p146 = scmp.eq.s32.totalorder %s18, 1
      %p147 = scmp.ne.s32.totalorder %s142, %s144
      %p148 = scmp.eq.s32.totalorder %s18, 0
      %p149 = por %p147, %p148
      %p150 = scmp.ne.s32.totalorder %s142, %s144
      %p151 = scmp.eq.s32.totalorder %s23, 1
      %p152 = por %p150, %p151
      %p153 = scmp.ne.s32.totalorder %s144, %s145
      %p154 = scmp.eq.s32.totalorder %s23, 0
      %p155 = por %p153, %p154
      %p156 = scmp.ne.s32.totalorder %s144, %s145
      %p157 = scmp.eq.s32.totalorder %s24, 1
      %p158 = por %p156, %p157
      %p160 = scmp.ne.s32.totalorder %s145, %s159
      %p161 = scmp.eq.s32.totalorder %s24, 0
      %p162 = por %p160, %p161
      %s163 = ssub.s32 %s25, %s37
      %p164 = scmp.eq.s32.totalorder %s163, 0
      %s166 = sadd.s32 %s165, 1
      %s167 = scalar_select %p164, %s165, %s166
      %p170 = pneg %p164
      %p171 = scmp.eq.s32.totalorder %s18, 1
      %p172 = por %p170, %p171
      %p173 = scmp.ne.s32.totalorder %s165, %s168
      %p174 = scmp.eq.s32.totalorder %s18, 0
      %p175 = por %p173, %p174
      %p176 = scmp.ne.s32.totalorder %s165, %s168
      %p177 = scmp.eq.s32.totalorder %s23, 1
      %p178 = por %p176, %p177
      %p179 = scmp.ne.s32.totalorder %s168, %s169
      %p180 = scmp.eq.s32.totalorder %s23, 0
      %p181 = por %p179, %p180
      %p182 = scmp.ne.s32.totalorder %s168, %s169
      %p183 = scmp.eq.s32.totalorder %s24, 1
      %p184 = por %p182, %p183
      %p186 = scmp.ne.s32.totalorder %s169, %s185
      %p187 = scmp.eq.s32.totalorder %s24, 0
      %p188 = por %p186, %p187
      %p189 = scmp.le.s32.totalorder 1, %s18
      %p190 = scmp.lt.s32.totalorder %s18, 3
      %p191 = pnand %p189, %p190
      %p192 = pneg %p191
      // Predicated region
      $region9: #{tpu_custom_call.1} parent=5 // pred_check
        _
      $region10: #{tpu_custom_call.1} parent=5 // pred_check_branch
        %194 = sbr.rel (%p191) target = $region12
      $region11: #{tpu_custom_call.1} parent=5 // pred_region
        %s195 = ssub.s32 %s18, 1
        // Predicated region
        $region13: #{tpu_custom_call.1} parent=11 // pred_check
          %p196 = pneg %p82
        $region14: #{tpu_custom_call.1} parent=11 // pred_check_branch
          %198 = sbr.rel (%p196) target = $region16
        $region15: #{tpu_custom_call.1} parent=11 // pred_region
          %s199 = smul.u32 2, %s28
          %s201 = ssub.s32 2048, 2048
          %202 = vsyncadd [#allocation7], %s201
          %s203 = smul.addr %s199, 64
          %s204 = scalar_lea.hbm %s1, %s203
          %s205 = sshll.u32 [#allocation6], 4
          %s206 = int_to_ptr.vmem [resolvable:$true] %s205
          %211 = dma.hbm_to_vmem [thread:$0]  %s204, 2048, %s206, [#allocation7], 128, 128, 8
        $region16: #{tpu_custom_call.1} parent=11 // pred_fallthru
          _
        // Predicated region
        $region17: #{tpu_custom_call.1} parent=11 // pred_check
          %p212 = pneg %p108
        $region18: #{tpu_custom_call.1} parent=11 // pred_check_branch
          %214 = sbr.rel (%p212) target = $region20
        $region19: #{tpu_custom_call.1} parent=11 // pred_region
          %s215 = smul.u32 2, %s28
          %p216 = scmp.lt.s32.totalorder %s215, 1
          %s217 = scalar_select %p216, %s215, 1
          %s218 = scalar_lea.vmem %s2, %s217
          %s219 = smul.u32 2, %s28
        $region20: #{tpu_custom_call.1} parent=11 // pred_fallthru
          _
        // Predicated region
        $region21: #{tpu_custom_call.1} parent=11 // pred_check
          %p220 = pneg %p134
        $region22: #{tpu_custom_call.1} parent=11 // pred_check_branch
          %222 = sbr.rel (%p220) target = $region24
        $region23: #{tpu_custom_call.1} parent=11 // pred_region
          %s223 = smul.u32 32, %s28
          %s225 = ssub.s32 2048, 2048
          %226 = vsyncadd [#allocation7], %s225
          %s227 = smul.addr %s223, 64
          %s228 = scalar_lea.hbm %s3, %s227
          %s229 = sshll.u32 [#allocation8], 4
          %s230 = int_to_ptr.vmem [resolvable:$true] %s229
          %235 = dma.hbm_to_vmem [thread:$0]  %s228, 2048, %s230, [#allocation7], 64, 64, 4
        $region24: #{tpu_custom_call.1} parent=11 // pred_fallthru
          _
        // Predicated region
        $region25: #{tpu_custom_call.1} parent=11 // pred_check
          %p236 = pneg %p155
        $region26: #{tpu_custom_call.1} parent=11 // pred_check_branch
          %238 = sbr.rel (%p236) target = $region28
        $region27: #{tpu_custom_call.1} parent=11 // pred_region
          _
        $region28: #{tpu_custom_call.1} parent=11 // pred_fallthru
          _
      $region12: #{tpu_custom_call.1} parent=5 // pred_fallthru
        _
      %p239 = scmp.lt.s32.totalorder %s18, 2
      // Predicated region
      $region29: #{tpu_custom_call.1} parent=5 // pred_check
        %p240 = pneg %p239
      $region30: #{tpu_custom_call.1} parent=5 // pred_check_branch
        %242 = sbr.rel (%p240) target = $region32
      $region31: #{tpu_custom_call.1} parent=5 // pred_region
        // Predicated region
        $region33: #{tpu_custom_call.1} parent=31 // pred_check
          %p243 = pneg %p50
        $region34: #{tpu_custom_call.1} parent=31 // pred_check_branch
          %245 = sbr.rel (%p243) target = $region36
        $region35: #{tpu_custom_call.1} parent=31 // pred_region
          %s246 = sand.u32 %s40, 1
          %s247 = scalar_lea.sflag [#allocation4], %s246
          %s248 = sand.u32 %s40, 1
          %s249 = smul.addr %s248, 256
          %s250 = scalar_lea.vmem [#allocation3], %s249
          %s251 = smul.u32 32, %s25
          %s253 = ssub.s32 4096, 4096
          %254 = vsyncadd %s247, %s253
          %s255 = smul.addr %s251, 128
          %s256 = scalar_lea.hbm %s0, %s255
          %s257 = sshll.u32 %s250, 4
          %s258 = int_to_ptr.vmem [resolvable:$true] %s257
          %263 = dma.hbm_to_vmem [thread:$0]  %s256, 4096, %s258, %s247, 128, 128, 8
        $region36: #{tpu_custom_call.1} parent=31 // pred_fallthru
          _
      $region32: #{tpu_custom_call.1} parent=5 // pred_fallthru
        _
      %p264 = scmp.le.s32.totalorder 1, %s18
      %p265 = scmp.lt.s32.totalorder %s18, 3
      %p266 = pnand %p264, %p265
      %p267 = pneg %p266
      // Predicated region
      $region37: #{tpu_custom_call.1} parent=5 // pred_check
        _
      $region38: #{tpu_custom_call.1} parent=5 // pred_check_branch
        %269 = sbr.rel (%p266) target = $region40
      $region39: #{tpu_custom_call.1} parent=5 // pred_region
        %s270 = ssub.s32 %s18, 1
        %s271 = sand.u32 %s43, 1
        %s272 = scalar_lea.sflag [#allocation4], %s271
        %s273 = sand.u32 %s43, 1
        %s274 = smul.addr %s273, 256
        %s275 = scalar_lea.vmem [#allocation3], %s274
        // Predicated region
        $region41: #{tpu_custom_call.1} parent=39 // pred_check
          %p276 = pneg %p56
        $region42: #{tpu_custom_call.1} parent=39 // pred_check_branch
          %278 = sbr.rel (%p276) target = $region44
        $region43: #{tpu_custom_call.1} parent=39 // pred_region
          %279 = dma.done %s272, 4096
        $region44: #{tpu_custom_call.1} parent=39 // pred_fallthru
          _
        // Predicated region
        $region45: #{tpu_custom_call.1} parent=39 // pred_check
          %p280 = pneg %p82
        $region46: #{tpu_custom_call.1} parent=39 // pred_check_branch
          %282 = sbr.rel (%p280) target = $region48
        $region47: #{tpu_custom_call.1} parent=39 // pred_region
          %283 = dma.done [#allocation7], 2048
        $region48: #{tpu_custom_call.1} parent=39 // pred_fallthru
          _
        // Predicated region
        $region49: #{tpu_custom_call.1} parent=39 // pred_check
          %p284 = pneg %p134
        $region50: #{tpu_custom_call.1} parent=39 // pred_check_branch
          %286 = sbr.rel (%p284) target = $region52
        $region51: #{tpu_custom_call.1} parent=39 // pred_region
          %287 = dma.done [#allocation7], 2048
        $region52: #{tpu_custom_call.1} parent=39 // pred_fallthru
          _
        %s288 = sand.u32 %s43, 1
        %s289 = scalar_lea.sflag [#allocation4], %s288
        %s290 = sand.u32 %s43, 1
        %s291 = smul.addr %s290, 256
        %s292 = scalar_lea.vmem [#allocation3], %s291
        %p293 = pneg %p56
        %p294 = pneg %p53
        %p295 = pneg %p82
        %p296 = pneg %p79
        %s297 = smul.u32 2, %s28
        %p298 = scmp.lt.s32.totalorder %s297, 1
        %s299 = scalar_select %p298, %s297, 1
        %s300 = scalar_lea.vmem %s2, %s299
        %p301 = pneg %p108
        %p302 = pneg %p105
        %p303 = pneg %p134
        %p304 = pneg %p131
        %p305 = pneg %p155
        %p306 = pneg %p152
        %p307 = pneg %p181
        %p308 = pneg %p178
        %s309 = sand.u32 %s168, 1
        %s310 = scalar_lea.sflag [#allocation5], %s309
        %s311 = sand.u32 %s168, 1
        %s312 = smul.addr %s311, 256
        %s313 = scalar_lea.vmem [#allocation9], %s312
        %s314 = smul.u32 32, %s27
        %s315 = smul.u32 2, %s28
        %s316 = smul.u32 2, %s28
        %p317 = scmp.lt.s32.totalorder %s316, 1
        %s318 = scalar_select %p317, %s316, 1
        %s319 = scalar_lea.vmem %s2, %s318
        %s320 = smul.u32 2, %s28
        %s321 = smul.u32 32, %s28
        %s322 = smul.u32 32, %s27
        %p324 = scmp.eq.s32.totalorder %s28, 0
        // Predicated region
        $region53: #{tpu_custom_call.1} parent=39 // pred_check
          %p325 = pneg %p324
        $region54: #{tpu_custom_call.1} parent=39 // pred_check_branch
          %327 = sbr.rel (%p325) target = $region56
        $region55: #{tpu_custom_call.1} parent=39 // pred_region
          %328 = vst [vmem:[#allocation2] sm:$0xff] 0.0
          %329 = vst [vmem:[#allocation2 + $0x8] sm:$0xff] 0.0
          %330 = vst [vmem:[#allocation2 + $0x10] sm:$0xff] 0.0
          %331 = vst [vmem:[#allocation2 + $0x18] sm:$0xff] 0.0
          %332 = vst [vmem:[#allocation2 + $0x20] sm:$0xff] 0.0
          %333 = vst [vmem:[#allocation2 + $0x28] sm:$0xff] 0.0
          %334 = vst [vmem:[#allocation2 + $0x30] sm:$0xff] 0.0
          %335 = vst [vmem:[#allocation2 + $0x38] sm:$0xff] 0.0
          %336 = vst [vmem:[#allocation2 + $0x40] sm:$0xff] 0.0
          %337 = vst [vmem:[#allocation2 + $0x48] sm:$0xff] 0.0
          %338 = vst [vmem:[#allocation2 + $0x50] sm:$0xff] 0.0
          %339 = vst [vmem:[#allocation2 + $0x58] sm:$0xff] 0.0
          %340 = vst [vmem:[#allocation2 + $0x60] sm:$0xff] 0.0
          %341 = vst [vmem:[#allocation2 + $0x68] sm:$0xff] 0.0
          %342 = vst [vmem:[#allocation2 + $0x70] sm:$0xff] 0.0
          %343 = vst [vmem:[#allocation2 + $0x78] sm:$0xff] 0.0
          %344 = vst [vmem:[#allocation2 + $0x80] sm:$0xff] 0.0
          %345 = vst [vmem:[#allocation2 + $0x88] sm:$0xff] 0.0
          %346 = vst [vmem:[#allocation2 + $0x90] sm:$0xff] 0.0
          %347 = vst [vmem:[#allocation2 + $0x98] sm:$0xff] 0.0
          %348 = vst [vmem:[#allocation2 + $0xa0] sm:$0xff] 0.0
          %349 = vst [vmem:[#allocation2 + $0xa8] sm:$0xff] 0.0
          %350 = vst [vmem:[#allocation2 + $0xb0] sm:$0xff] 0.0
          %351 = vst [vmem:[#allocation2 + $0xb8] sm:$0xff] 0.0
          %352 = vst [vmem:[#allocation2 + $0xc0] sm:$0xff] 0.0
          %353 = vst [vmem:[#allocation2 + $0xc8] sm:$0xff] 0.0
          %354 = vst [vmem:[#allocation2 + $0xd0] sm:$0xff] 0.0
          %355 = vst [vmem:[#allocation2 + $0xd8] sm:$0xff] 0.0
          %356 = vst [vmem:[#allocation2 + $0xe0] sm:$0xff] 0.0
          %357 = vst [vmem:[#allocation2 + $0xe8] sm:$0xff] 0.0
          %358 = vst [vmem:[#allocation2 + $0xf0] sm:$0xff] 0.0
          %359 = vst [vmem:[#allocation2 + $0xf8] sm:$0xff] 0.0
        $region56: #{tpu_custom_call.1} parent=39 // pred_fallthru
          _
        %v360 = vld [vmem:[%s275] sm:$0xff]
        %v361 = vld [vmem:[%s275 + $0x8] sm:$0xff]
        %v362 = vld [vmem:[%s275 + $0x10] sm:$0xff]
        %v363 = vld [vmem:[%s275 + $0x18] sm:$0xff]
        %v364 = vld [vmem:[%s275 + $0x20] sm:$0xff]
        %v365 = vld [vmem:[%s275 + $0x28] sm:$0xff]
        %v366 = vld [vmem:[%s275 + $0x30] sm:$0xff]
        %v367 = vld [vmem:[%s275 + $0x38] sm:$0xff]
        %v368 = vld [vmem:[%s275 + $0x40] sm:$0xff]
        %v369 = vld [vmem:[%s275 + $0x48] sm:$0xff]
        %v370 = vld [vmem:[%s275 + $0x50] sm:$0xff]
        %v371 = vld [vmem:[%s275 + $0x58] sm:$0xff]
        %v372 = vld [vmem:[%s275 + $0x60] sm:$0xff]
        %v373 = vld [vmem:[%s275 + $0x68] sm:$0xff]
        %v374 = vld [vmem:[%s275 + $0x70] sm:$0xff]
        %v375 = vld [vmem:[%s275 + $0x78] sm:$0xff]
        %v376 = vld [vmem:[%s275 + $0x80] sm:$0xff]
        %v377 = vld [vmem:[%s275 + $0x88] sm:$0xff]
        %v378 = vld [vmem:[%s275 + $0x90] sm:$0xff]
        %v379 = vld [vmem:[%s275 + $0x98] sm:$0xff]
        %v380 = vld [vmem:[%s275 + $0xa0] sm:$0xff]
        %v381 = vld [vmem:[%s275 + $0xa8] sm:$0xff]
        %v382 = vld [vmem:[%s275 + $0xb0] sm:$0xff]
        %v383 = vld [vmem:[%s275 + $0xb8] sm:$0xff]
        %v384 = vld [vmem:[%s275 + $0xc0] sm:$0xff]
        %v385 = vld [vmem:[%s275 + $0xc8] sm:$0xff]
        %v386 = vld [vmem:[%s275 + $0xd0] sm:$0xff]
        %v387 = vld [vmem:[%s275 + $0xd8] sm:$0xff]
        %v388 = vld [vmem:[%s275 + $0xe0] sm:$0xff]
        %v389 = vld [vmem:[%s275 + $0xe8] sm:$0xff]
        %v390 = vld [vmem:[%s275 + $0xf0] sm:$0xff]
        %v391 = vld [vmem:[%s275 + $0xf8] sm:$0xff]
        %v392 = vpack.c.bf16 %v361, %v360
        %v393 = vpack.c.bf16 %v363, %v362
        %v394 = vpack.c.bf16 %v365, %v364
        %v395 = vpack.c.bf16 %v367, %v366
        %v396 = vpack.c.bf16 %v369, %v368
        %v397 = vpack.c.bf16 %v371, %v370
        %v398 = vpack.c.bf16 %v373, %v372
        %v399 = vpack.c.bf16 %v375, %v374
        %v400 = vpack.c.bf16 %v377, %v376
        %v401 = vpack.c.bf16 %v379, %v378
        %v402 = vpack.c.bf16 %v381, %v380
        %v403 = vpack.c.bf16 %v383, %v382
        %v404 = vpack.c.bf16 %v385, %v384
        %v405 = vpack.c.bf16 %v387, %v386
        %v406 = vpack.c.bf16 %v389, %v388
        %v407 = vpack.c.bf16 %v391, %v390
        %v408 = vld [vmem:[#allocation6] sm:$0xff]
        %v409 = vld [vmem:[#allocation6 + $0x8] sm:$0xff]
        %v410 = vld [vmem:[#allocation6 + $0x10] sm:$0xff]
        %v411 = vld [vmem:[#allocation6 + $0x18] sm:$0xff]
        %v412 = vld [vmem:[#allocation6 + $0x20] sm:$0xff]
        %v413 = vld [vmem:[#allocation6 + $0x28] sm:$0xff]
        %v414 = vld [vmem:[#allocation6 + $0x30] sm:$0xff]
        %v415 = vld [vmem:[#allocation6 + $0x38] sm:$0xff]
        %v416 = vld [vmem:[#allocation6 + $0x40] sm:$0xff]
        %v417 = vld [vmem:[#allocation6 + $0x48] sm:$0xff]
        %v418 = vld [vmem:[#allocation6 + $0x50] sm:$0xff]
        %v419 = vld [vmem:[#allocation6 + $0x58] sm:$0xff]
        %v420 = vld [vmem:[#allocation6 + $0x60] sm:$0xff]
        %v421 = vld [vmem:[#allocation6 + $0x68] sm:$0xff]
        %v422 = vld [vmem:[#allocation6 + $0x70] sm:$0xff]
        %v423 = vld [vmem:[#allocation6 + $0x78] sm:$0xff]
        %v424 = vld [vmem:[%s319] sm:$0x3]
        %v426 = vlaneseq
        %v427 = vshrl.u32 %v426, 7
        %v428 = vsub.s32 0, %v427
        %v429 = vrot.slane %v424, %v428
        %v430 = vlaneseq
        %v431 = vshrl.u32 %v430, 7
        %v432 = vsub.s32 1, %v431
        %v433 = vrot.slane %v424, %v432
        %v452 = vunpack.c.l.b16 %v408
        %v453 = vunpack.c.h.b16 %v408
        %v454 = vunpack.c.l.b16 %v409
        %v455 = vunpack.c.h.b16 %v409
        %v456 = vunpack.c.l.b16 %v410
        %v457 = vunpack.c.h.b16 %v410
        %v458 = vunpack.c.l.b16 %v411
        %v459 = vunpack.c.h.b16 %v411
        %v460 = vunpack.c.l.b16 %v412
        %v461 = vunpack.c.h.b16 %v412
        %v462 = vunpack.c.l.b16 %v413
        %v463 = vunpack.c.h.b16 %v413
        %v464 = vunpack.c.l.b16 %v414
        %v465 = vunpack.c.h.b16 %v414
        %v466 = vunpack.c.l.b16 %v415
        %v467 = vunpack.c.h.b16 %v415
        %v468 = vunpack.c.l.b16 %v416
        %v469 = vunpack.c.h.b16 %v416
        %v470 = vunpack.c.l.b16 %v417
        %v471 = vunpack.c.h.b16 %v417
        %v472 = vunpack.c.l.b16 %v418
        %v473 = vunpack.c.h.b16 %v418
        %v474 = vunpack.c.l.b16 %v419
        %v475 = vunpack.c.h.b16 %v419
        %v476 = vunpack.c.l.b16 %v420
        %v477 = vunpack.c.h.b16 %v420
        %v478 = vunpack.c.l.b16 %v421
        %v479 = vunpack.c.h.b16 %v421
        %v480 = vunpack.c.l.b16 %v422
        %v481 = vunpack.c.h.b16 %v422
        %v482 = vunpack.c.l.b16 %v423
        %v483 = vunpack.c.h.b16 %v423
        %v484 = vpack.c.b16 %v454, %v452
        %v485 = vpack.c.b16 %v455, %v453
        %v486 = vpack.c.b16 %v458, %v456
        %v487 = vpack.c.b16 %v459, %v457
        %v488 = vpack.c.b16 %v462, %v460
        %v489 = vpack.c.b16 %v463, %v461
        %v490 = vpack.c.b16 %v466, %v464
        %v491 = vpack.c.b16 %v467, %v465
        %v492 = vpack.c.b16 %v470, %v468
        %v493 = vpack.c.b16 %v471, %v469
        %v494 = vpack.c.b16 %v474, %v472
        %v495 = vpack.c.b16 %v475, %v473
        %v496 = vpack.c.b16 %v478, %v476
        %v497 = vpack.c.b16 %v479, %v477
        %v498 = vpack.c.b16 %v482, %v480
        %v499 = vpack.c.b16 %v483, %v481
        %516 = vmatprep.subr.bf16.mxu0 %v499
        %517 = vmatpush1.bf16.msra.mxu0 %v498
        %518 = vmatprep.subr.bf16.mxu0 %v497
        %519 = vmatpush1.bf16.msra.mxu0 %v496
        %520 = vmatprep.subr.bf16.mxu0 %v495
        %521 = vmatpush1.bf16.msra.mxu0 %v494
        %522 = vmatprep.subr.bf16.mxu0 %v493
        %523 = vmatpush1.bf16.msra.mxu0 %v492
        %524 = vmatprep.subr.bf16.mxu0 %v491
        %525 = vmatpush1.bf16.msra.mxu0 %v490
        %526 = vmatprep.subr.bf16.mxu0 %v489
        %527 = vmatpush1.bf16.msra.mxu0 %v488
        %528 = vmatprep.subr.bf16.mxu0 %v487
        %529 = vmatpush1.bf16.msra.mxu0 %v486
        %530 = vmatprep.subr.bf16.mxu0 %v485
        %531 = vmatpush1.bf16.msra.mxu0 %v484
        %532 = vmatprep.subr.bf16.mxu0 0
        %533 = vmatpush2.bf16.msra.mxu0 0
        %534 = vmatprep.subr.bf16.mxu0 0
        %535 = vmatpush2.bf16.msra.mxu0 0
        %536 = vmatprep.subr.bf16.mxu0 0
        %537 = vmatpush2.bf16.msra.mxu0 0
        %538 = vmatprep.subr.bf16.mxu0 0
        %539 = vmatpush2.bf16.msra.mxu0 0
        %540 = vmatprep.subr.bf16.mxu0 0
        %541 = vmatpush2.bf16.msra.mxu0 0
        %542 = vmatprep.subr.bf16.mxu0 0
        %543 = vmatpush2.bf16.msra.mxu0 0
        %544 = vmatprep.subr.bf16.mxu0 0
        %545 = vmatpush2.bf16.msra.mxu0 0
        %546 = vmatprep.subr.bf16.mxu0 0
        %547 = vmatpush2.bf16.msra.mxu0 0
        %548 = vmatprep.mubr.bf16.mxu0 0
        %549 = vmatmul.mubr.bf16.gmra.mxu0 %v392
        %v550 = vpop.f32.mrf.mxu0
        %v551 = vadd.f32 %v429, %v550
        %v552 = vpop.f32.mrf.mxu0
        %v553 = vadd.f32 %v433, %v552
        %v554 = vpop.f32.mrf.mxu0
        %v555 = vadd.f32 %v429, %v554
        %v556 = vpop.f32.mrf.mxu0
        %v557 = vadd.f32 %v433, %v556
        %558 = vmatprep.mubr.bf16.mxu0 0
        %559 = vmatmul.mubr.bf16.gmra.mxu0 %v393
        %v560 = vpop.f32.mrf.mxu0
        %v561 = vadd.f32 %v429, %v560
        %v562 = vpop.f32.mrf.mxu0
        %v563 = vadd.f32 %v433, %v562
        %v564 = vpop.f32.mrf.mxu0
        %v565 = vadd.f32 %v429, %v564
        %v566 = vpop.f32.mrf.mxu0
        %v567 = vadd.f32 %v433, %v566
        %568 = vmatprep.mubr.bf16.mxu0 0
        %569 = vmatmul.mubr.bf16.gmra.mxu0 %v394
        %v570 = vpop.f32.mrf.mxu0
        %v571 = vadd.f32 %v429, %v570
        %v572 = vpop.f32.mrf.mxu0
        %v573 = vadd.f32 %v433, %v572
        %v574 = vpop.f32.mrf.mxu0
        %v575 = vadd.f32 %v429, %v574
        %v576 = vpop.f32.mrf.mxu0
        %v577 = vadd.f32 %v433, %v576
        %578 = vmatprep.mubr.bf16.mxu0 0
        %579 = vmatmul.mubr.bf16.gmra.mxu0 %v395
        %v580 = vpop.f32.mrf.mxu0
        %v581 = vadd.f32 %v429, %v580
        %v582 = vpop.f32.mrf.mxu0
        %v583 = vadd.f32 %v433, %v582
        %v584 = vpop.f32.mrf.mxu0
        %v585 = vadd.f32 %v429, %v584
        %v586 = vpop.f32.mrf.mxu0
        %v587 = vadd.f32 %v433, %v586
        %588 = vmatprep.mubr.bf16.mxu0 0
        %589 = vmatmul.mubr.bf16.gmra.mxu0 %v396
        %v590 = vpop.f32.mrf.mxu0
        %v591 = vadd.f32 %v429, %v590
        %v592 = vpop.f32.mrf.mxu0
        %v593 = vadd.f32 %v433, %v592
        %v594 = vpop.f32.mrf.mxu0
        %v595 = vadd.f32 %v429, %v594
        %v596 = vpop.f32.mrf.mxu0
        %v597 = vadd.f32 %v433, %v596
        %598 = vmatprep.mubr.bf16.mxu0 0
        %599 = vmatmul.mubr.bf16.gmra.mxu0 %v397
        %v600 = vpop.f32.mrf.mxu0
        %v601 = vadd.f32 %v429, %v600
        %v602 = vpop.f32.mrf.mxu0
        %v603 = vadd.f32 %v433, %v602
        %v604 = vpop.f32.mrf.mxu0
        %v605 = vadd.f32 %v429, %v604
        %v606 = vpop.f32.mrf.mxu0
        %v607 = vadd.f32 %v433, %v606
        %608 = vmatprep.mubr.bf16.mxu0 0
        %609 = vmatmul.mubr.bf16.gmra.mxu0 %v398
        %v610 = vpop.f32.mrf.mxu0
        %v611 = vadd.f32 %v429, %v610
        %v612 = vpop.f32.mrf.mxu0
        %v613 = vadd.f32 %v433, %v612
        %v614 = vpop.f32.mrf.mxu0
        %v615 = vadd.f32 %v429, %v614
        %v616 = vpop.f32.mrf.mxu0
        %v617 = vadd.f32 %v433, %v616
        %618 = vmatprep.mubr.bf16.mxu0 0
        %619 = vmatmul.mubr.bf16.gmra.mxu0 %v399
        %v620 = vpop.f32.mrf.mxu0
        %v621 = vadd.f32 %v429, %v620
        %v622 = vpop.f32.mrf.mxu0
        %v623 = vadd.f32 %v433, %v622
        %v624 = vpop.f32.mrf.mxu0
        %v625 = vadd.f32 %v429, %v624
        %v626 = vpop.f32.mrf.mxu0
        %v627 = vadd.f32 %v433, %v626
        %628 = vmatprep.mubr.bf16.mxu0 0
        %629 = vmatmul.mubr.bf16.gmra.mxu0 %v400
        %v630 = vpop.f32.mrf.mxu0
        %v631 = vadd.f32 %v429, %v630
        %v632 = vpop.f32.mrf.mxu0
        %v633 = vadd.f32 %v433, %v632
        %v634 = vpop.f32.mrf.mxu0
        %v635 = vadd.f32 %v429, %v634
        %v636 = vpop.f32.mrf.mxu0
        %v637 = vadd.f32 %v433, %v636
        %638 = vmatprep.mubr.bf16.mxu0 0
        %639 = vmatmul.mubr.bf16.gmra.mxu0 %v401
        %v640 = vpop.f32.mrf.mxu0
        %v641 = vadd.f32 %v429, %v640
        %v642 = vpop.f32.mrf.mxu0
        %v643 = vadd.f32 %v433, %v642
        %v644 = vpop.f32.mrf.mxu0
        %v645 = vadd.f32 %v429, %v644
        %v646 = vpop.f32.mrf.mxu0
        %v647 = vadd.f32 %v433, %v646
        %648 = vmatprep.mubr.bf16.mxu0 0
        %649 = vmatmul.mubr.bf16.gmra.mxu0 %v402
        %v650 = vpop.f32.mrf.mxu0
        %v651 = vadd.f32 %v429, %v650
        %v652 = vpop.f32.mrf.mxu0
        %v653 = vadd.f32 %v433, %v652
        %v654 = vpop.f32.mrf.mxu0
        %v655 = vadd.f32 %v429, %v654
        %v656 = vpop.f32.mrf.mxu0
        %v657 = vadd.f32 %v433, %v656
        %658 = vmatprep.mubr.bf16.mxu0 0
        %659 = vmatmul.mubr.bf16.gmra.mxu0 %v403
        %v660 = vpop.f32.mrf.mxu0
        %v661 = vadd.f32 %v429, %v660
        %v662 = vpop.f32.mrf.mxu0
        %v663 = vadd.f32 %v433, %v662
        %v664 = vpop.f32.mrf.mxu0
        %v665 = vadd.f32 %v429, %v664
        %v666 = vpop.f32.mrf.mxu0
        %v667 = vadd.f32 %v433, %v666
        %668 = vmatprep.mubr.bf16.mxu0 0
        %669 = vmatmul.mubr.bf16.gmra.mxu0 %v404
        %v670 = vpop.f32.mrf.mxu0
        %v671 = vadd.f32 %v429, %v670
        %v672 = vpop.f32.mrf.mxu0
        %v673 = vadd.f32 %v433, %v672
        %v674 = vpop.f32.mrf.mxu0
        %v675 = vadd.f32 %v429, %v674
        %v676 = vpop.f32.mrf.mxu0
        %v677 = vadd.f32 %v433, %v676
        %678 = vmatprep.mubr.bf16.mxu0 0
        %679 = vmatmul.mubr.bf16.gmra.mxu0 %v405
        %v680 = vpop.f32.mrf.mxu0
        %v681 = vadd.f32 %v429, %v680
        %v682 = vpop.f32.mrf.mxu0
        %v683 = vadd.f32 %v433, %v682
        %v684 = vpop.f32.mrf.mxu0
        %v685 = vadd.f32 %v429, %v684
        %v686 = vpop.f32.mrf.mxu0
        %v687 = vadd.f32 %v433, %v686
        %688 = vmatprep.mubr.bf16.mxu0 0
        %689 = vmatmul.mubr.bf16.gmra.mxu0 %v406
        %v690 = vpop.f32.mrf.mxu0
        %v691 = vadd.f32 %v429, %v690
        %v692 = vpop.f32.mrf.mxu0
        %v693 = vadd.f32 %v433, %v692
        %v694 = vpop.f32.mrf.mxu0
        %v695 = vadd.f32 %v429, %v694
        %v696 = vpop.f32.mrf.mxu0
        %v697 = vadd.f32 %v433, %v696
        %698 = vmatprep.mubr.bf16.mxu0 0
        %699 = vmatmul.mubr.bf16.gmra.mxu0 %v407
        %v700 = vpop.f32.mrf.mxu0
        %v701 = vadd.f32 %v429, %v700
        %v702 = vpop.f32.mrf.mxu0
        %v703 = vadd.f32 %v433, %v702
        %v704 = vpop.f32.mrf.mxu0
        %v705 = vadd.f32 %v429, %v704
        %v706 = vpop.f32.mrf.mxu0
        %v707 = vadd.f32 %v433, %v706
        %708 = vdwg.mxu0
        %v709 = vxor.u32 %v551, 2147483648
        %v710 = vxor.u32 %v553, 2147483648
        %v711 = vxor.u32 %v555, 2147483648
        %v712 = vxor.u32 %v557, 2147483648
        %v713 = vxor.u32 %v561, 2147483648
        %v714 = vxor.u32 %v563, 2147483648
        %v715 = vxor.u32 %v565, 2147483648
        %v716 = vxor.u32 %v567, 2147483648
        %v717 = vxor.u32 %v571, 2147483648
        %v718 = vxor.u32 %v573, 2147483648
        %v719 = vxor.u32 %v575, 2147483648
        %v720 = vxor.u32 %v577, 2147483648
        %v721 = vxor.u32 %v581, 2147483648
        %v722 = vxor.u32 %v583, 2147483648
        %v723 = vxor.u32 %v585, 2147483648
        %v724 = vxor.u32 %v587, 2147483648
        %v725 = vxor.u32 %v591, 2147483648
        %v726 = vxor.u32 %v593, 2147483648
        %v727 = vxor.u32 %v595, 2147483648
        %v728 = vxor.u32 %v597, 2147483648
        %v729 = vxor.u32 %v601, 2147483648
        %v730 = vxor.u32 %v603, 2147483648
        %v731 = vxor.u32 %v605, 2147483648
        %v732 = vxor.u32 %v607, 2147483648
        %v733 = vxor.u32 %v611, 2147483648
        %v734 = vxor.u32 %v613, 2147483648
        %v735 = vxor.u32 %v615, 2147483648
        %v736 = vxor.u32 %v617, 2147483648
        %v737 = vxor.u32 %v621, 2147483648
        %v738 = vxor.u32 %v623, 2147483648
        %v739 = vxor.u32 %v625, 2147483648
        %v740 = vxor.u32 %v627, 2147483648
        %v741 = vxor.u32 %v631, 2147483648
        %v742 = vxor.u32 %v633, 2147483648
        %v743 = vxor.u32 %v635, 2147483648
        %v744 = vxor.u32 %v637, 2147483648
        %v745 = vxor.u32 %v641, 2147483648
        %v746 = vxor.u32 %v643, 2147483648
        %v747 = vxor.u32 %v645, 2147483648
        %v748 = vxor.u32 %v647, 2147483648
        %v749 = vxor.u32 %v651, 2147483648
        %v750 = vxor.u32 %v653, 2147483648
        %v751 = vxor.u32 %v655, 2147483648
        %v752 = vxor.u32 %v657, 2147483648
        %v753 = vxor.u32 %v661, 2147483648
        %v754 = vxor.u32 %v663, 2147483648
        %v755 = vxor.u32 %v665, 2147483648
        %v756 = vxor.u32 %v667, 2147483648
        %v757 = vxor.u32 %v671, 2147483648
        %v758 = vxor.u32 %v673, 2147483648
        %v759 = vxor.u32 %v675, 2147483648
        %v760 = vxor.u32 %v677, 2147483648
        %v761 = vxor.u32 %v681, 2147483648
        %v762 = vxor.u32 %v683, 2147483648
        %v763 = vxor.u32 %v685, 2147483648
        %v764 = vxor.u32 %v687, 2147483648
        %v765 = vxor.u32 %v691, 2147483648
        %v766 = vxor.u32 %v693, 2147483648
        %v767 = vxor.u32 %v695, 2147483648
        %v768 = vxor.u32 %v697, 2147483648
        %v769 = vxor.u32 %v701, 2147483648
        %v770 = vxor.u32 %v703, 2147483648
        %v771 = vxor.u32 %v705, 2147483648
        %v772 = vxor.u32 %v707, 2147483648
        %v773 = vmul.f32 %v709, 1.442695
        %v774 = vpow.pop %v773
        %v775 = vmul.f32 %v710, 1.442695
        %v776 = vpow.pop %v775
        %v777 = vmul.f32 %v711, 1.442695
        %v778 = vpow.pop %v777
        %v779 = vmul.f32 %v712, 1.442695
        %v780 = vpow.pop %v779
        %v781 = vmul.f32 %v713, 1.442695
        %v782 = vpow.pop %v781
        %v783 = vmul.f32 %v714, 1.442695
        %v784 = vpow.pop %v783
        %v785 = vmul.f32 %v715, 1.442695
        %v786 = vpow.pop %v785
        %v787 = vmul.f32 %v716, 1.442695
        %v788 = vpow.pop %v787
        %v789 = vmul.f32 %v717, 1.442695
        %v790 = vpow.pop %v789
        %v791 = vmul.f32 %v718, 1.442695
        %v792 = vpow.pop %v791
        %v793 = vmul.f32 %v719, 1.442695
        %v794 = vpow.pop %v793
        %v795 = vmul.f32 %v720, 1.442695
        %v796 = vpow.pop %v795
        %v797 = vmul.f32 %v721, 1.442695
        %v798 = vpow.pop %v797
        %v799 = vmul.f32 %v722, 1.442695
        %v800 = vpow.pop %v799
        %v801 = vmul.f32 %v723, 1.442695
        %v802 = vpow.pop %v801
        %v803 = vmul.f32 %v724, 1.442695
        %v804 = vpow.pop %v803
        %v805 = vmul.f32 %v725, 1.442695
        %v806 = vpow.pop %v805
        %v807 = vmul.f32 %v726, 1.442695
        %v808 = vpow.pop %v807
        %v809 = vmul.f32 %v727, 1.442695
        %v810 = vpow.pop %v809
        %v811 = vmul.f32 %v728, 1.442695
        %v812 = vpow.pop %v811
        %v813 = vmul.f32 %v729, 1.442695
        %v814 = vpow.pop %v813
        %v815 = vmul.f32 %v730, 1.442695
        %v816 = vpow.pop %v815
        %v817 = vmul.f32 %v731, 1.442695
        %v818 = vpow.pop %v817
        %v819 = vmul.f32 %v732, 1.442695
        %v820 = vpow.pop %v819
        %v821 = vmul.f32 %v733, 1.442695
        %v822 = vpow.pop %v821
        %v823 = vmul.f32 %v734, 1.442695
        %v824 = vpow.pop %v823
        %v825 = vmul.f32 %v735, 1.442695
        %v826 = vpow.pop %v825
        %v827 = vmul.f32 %v736, 1.442695
        %v828 = vpow.pop %v827
        %v829 = vmul.f32 %v737, 1.442695
        %v830 = vpow.pop %v829
        %v831 = vmul.f32 %v738, 1.442695
        %v832 = vpow.pop %v831
        %v833 = vmul.f32 %v739, 1.442695
        %v834 = vpow.pop %v833
        %v835 = vmul.f32 %v740, 1.442695
        %v836 = vpow.pop %v835
        %v837 = vmul.f32 %v741, 1.442695
        %v838 = vpow.pop %v837
        %v839 = vmul.f32 %v742, 1.442695
        %v840 = vpow.pop %v839
        %v841 = vmul.f32 %v743, 1.442695
        %v842 = vpow.pop %v841
        %v843 = vmul.f32 %v744, 1.442695
        %v844 = vpow.pop %v843
        %v845 = vmul.f32 %v745, 1.442695
        %v846 = vpow.pop %v845
        %v847 = vmul.f32 %v746, 1.442695
        %v848 = vpow.pop %v847
        %v849 = vmul.f32 %v747, 1.442695
        %v850 = vpow.pop %v849
        %v851 = vmul.f32 %v748, 1.442695
        %v852 = vpow.pop %v851
        %v853 = vmul.f32 %v749, 1.442695
        %v854 = vpow.pop %v853
        %v855 = vmul.f32 %v750, 1.442695
        %v856 = vpow.pop %v855
        %v857 = vmul.f32 %v751, 1.442695
        %v858 = vpow.pop %v857
        %v859 = vmul.f32 %v752, 1.442695
        %v860 = vpow.pop %v859
        %v861 = vmul.f32 %v753, 1.442695
        %v862 = vpow.pop %v861
        %v863 = vmul.f32 %v754, 1.442695
        %v864 = vpow.pop %v863
        %v865 = vmul.f32 %v755, 1.442695
        %v866 = vpow.pop %v865
        %v867 = vmul.f32 %v756, 1.442695
        %v868 = vpow.pop %v867
        %v869 = vmul.f32 %v757, 1.442695
        %v870 = vpow.pop %v869
        %v871 = vmul.f32 %v758, 1.442695
        %v872 = vpow.pop %v871
        %v873 = vmul.f32 %v759, 1.442695
        %v874 = vpow.pop %v873
        %v875 = vmul.f32 %v760, 1.442695
        %v876 = vpow.pop %v875
        %v877 = vmul.f32 %v761, 1.442695
        %v878 = vpow.pop %v877
        %v879 = vmul.f32 %v762, 1.442695
        %v880 = vpow.pop %v879
        %v881 = vmul.f32 %v763, 1.442695
        %v882 = vpow.pop %v881
        %v883 = vmul.f32 %v764, 1.442695
        %v884 = vpow.pop %v883
        %v885 = vmul.f32 %v765, 1.442695
        %v886 = vpow.pop %v885
        %v887 = vmul.f32 %v766, 1.442695
        %v888 = vpow.pop %v887
        %v889 = vmul.f32 %v767, 1.442695
        %v890 = vpow.pop %v889
        %v891 = vmul.f32 %v768, 1.442695
        %v892 = vpow.pop %v891
        %v893 = vmul.f32 %v769, 1.442695
        %v894 = vpow.pop %v893
        %v895 = vmul.f32 %v770, 1.442695
        %v896 = vpow.pop %v895
        %v897 = vmul.f32 %v771, 1.442695
        %v898 = vpow.pop %v897
        %v899 = vmul.f32 %v772, 1.442695
        %v900 = vpow.pop %v899
        %v901 = vadd.f32 %v774, 1.0
        %v902 = vadd.f32 %v776, 1.0
        %v903 = vadd.f32 %v778, 1.0
        %v904 = vadd.f32 %v780, 1.0
        %v905 = vadd.f32 %v782, 1.0
        %v906 = vadd.f32 %v784, 1.0
        %v907 = vadd.f32 %v786, 1.0
        %v908 = vadd.f32 %v788, 1.0
        %v909 = vadd.f32 %v790, 1.0
        %v910 = vadd.f32 %v792, 1.0
        %v911 = vadd.f32 %v794, 1.0
        %v912 = vadd.f32 %v796, 1.0
        %v913 = vadd.f32 %v798, 1.0
        %v914 = vadd.f32 %v800, 1.0
        %v915 = vadd.f32 %v802, 1.0
        %v916 = vadd.f32 %v804, 1.0
        %v917 = vadd.f32 %v806, 1.0
        %v918 = vadd.f32 %v808, 1.0
        %v919 = vadd.f32 %v810, 1.0
        %v920 = vadd.f32 %v812, 1.0
        %v921 = vadd.f32 %v814, 1.0
        %v922 = vadd.f32 %v816, 1.0
        %v923 = vadd.f32 %v818, 1.0
        %v924 = vadd.f32 %v820, 1.0
        %v925 = vadd.f32 %v822, 1.0
        %v926 = vadd.f32 %v824, 1.0
        %v927 = vadd.f32 %v826, 1.0
        %v928 = vadd.f32 %v828, 1.0
        %v929 = vadd.f32 %v830, 1.0
        %v930 = vadd.f32 %v832, 1.0
        %v931 = vadd.f32 %v834, 1.0
        %v932 = vadd.f32 %v836, 1.0
        %v933 = vadd.f32 %v838, 1.0
        %v934 = vadd.f32 %v840, 1.0
        %v935 = vadd.f32 %v842, 1.0
        %v936 = vadd.f32 %v844, 1.0
        %v937 = vadd.f32 %v846, 1.0
        %v938 = vadd.f32 %v848, 1.0
        %v939 = vadd.f32 %v850, 1.0
        %v940 = vadd.f32 %v852, 1.0
        %v941 = vadd.f32 %v854, 1.0
        %v942 = vadd.f32 %v856, 1.0
        %v943 = vadd.f32 %v858, 1.0
        %v944 = vadd.f32 %v860, 1.0
        %v945 = vadd.f32 %v862, 1.0
        %v946 = vadd.f32 %v864, 1.0
        %v947 = vadd.f32 %v866, 1.0
        %v948 = vadd.f32 %v868, 1.0
        %v949 = vadd.f32 %v870, 1.0
        %v950 = vadd.f32 %v872, 1.0
        %v951 = vadd.f32 %v874, 1.0
        %v952 = vadd.f32 %v876, 1.0
        %v953 = vadd.f32 %v878, 1.0
        %v954 = vadd.f32 %v880, 1.0
        %v955 = vadd.f32 %v882, 1.0
        %v956 = vadd.f32 %v884, 1.0
        %v957 = vadd.f32 %v886, 1.0
        %v958 = vadd.f32 %v888, 1.0
        %v959 = vadd.f32 %v890, 1.0
        %v960 = vadd.f32 %v892, 1.0
        %v961 = vadd.f32 %v894, 1.0
        %v962 = vadd.f32 %v896, 1.0
        %v963 = vadd.f32 %v898, 1.0
        %v964 = vadd.f32 %v900, 1.0
        %v965 = vrcp.pop %v901
        %v966 = vmul.f32 1.0, %v965
        %v967 = vrcp.pop %v902
        %v968 = vmul.f32 1.0, %v967
        %v969 = vrcp.pop %v903
        %v970 = vmul.f32 1.0, %v969
        %v971 = vrcp.pop %v904
        %v972 = vmul.f32 1.0, %v971
        %v973 = vrcp.pop %v905
        %v974 = vmul.f32 1.0, %v973
        %v975 = vrcp.pop %v906
        %v976 = vmul.f32 1.0, %v975
        %v977 = vrcp.pop %v907
        %v978 = vmul.f32 1.0, %v977
        %v979 = vrcp.pop %v908
        %v980 = vmul.f32 1.0, %v979
        %v981 = vrcp.pop %v909
        %v982 = vmul.f32 1.0, %v981
        %v983 = vrcp.pop %v910
        %v984 = vmul.f32 1.0, %v983
        %v985 = vrcp.pop %v911
        %v986 = vmul.f32 1.0, %v985
        %v987 = vrcp.pop %v912
        %v988 = vmul.f32 1.0, %v987
        %v989 = vrcp.pop %v913
        %v990 = vmul.f32 1.0, %v989
        %v991 = vrcp.pop %v914
        %v992 = vmul.f32 1.0, %v991
        %v993 = vrcp.pop %v915
        %v994 = vmul.f32 1.0, %v993
        %v995 = vrcp.pop %v916
        %v996 = vmul.f32 1.0, %v995
        %v997 = vrcp.pop %v917
        %v998 = vmul.f32 1.0, %v997
        %v999 = vrcp.pop %v918
        %v1000 = vmul.f32 1.0, %v999
        %v1001 = vrcp.pop %v919
        %v1002 = vmul.f32 1.0, %v1001
        %v1003 = vrcp.pop %v920
        %v1004 = vmul.f32 1.0, %v1003
        %v1005 = vrcp.pop %v921
        %v1006 = vmul.f32 1.0, %v1005
        %v1007 = vrcp.pop %v922
        %v1008 = vmul.f32 1.0, %v1007
        %v1009 = vrcp.pop %v923
        %v1010 = vmul.f32 1.0, %v1009
        %v1011 = vrcp.pop %v924
        %v1012 = vmul.f32 1.0, %v1011
        %v1013 = vrcp.pop %v925
        %v1014 = vmul.f32 1.0, %v1013
        %v1015 = vrcp.pop %v926
        %v1016 = vmul.f32 1.0, %v1015
        %v1017 = vrcp.pop %v927
        %v1018 = vmul.f32 1.0, %v1017
        %v1019 = vrcp.pop %v928
        %v1020 = vmul.f32 1.0, %v1019
        %v1021 = vrcp.pop %v929
        %v1022 = vmul.f32 1.0, %v1021
        %v1023 = vrcp.pop %v930
        %v1024 = vmul.f32 1.0, %v1023
        %v1025 = vrcp.pop %v931
        %v1026 = vmul.f32 1.0, %v1025
        %v1027 = vrcp.pop %v932
        %v1028 = vmul.f32 1.0, %v1027
        %v1029 = vrcp.pop %v933
        %v1030 = vmul.f32 1.0, %v1029
        %v1031 = vrcp.pop %v934
        %v1032 = vmul.f32 1.0, %v1031
        %v1033 = vrcp.pop %v935
        %v1034 = vmul.f32 1.0, %v1033
        %v1035 = vrcp.pop %v936
        %v1036 = vmul.f32 1.0, %v1035
        %v1037 = vrcp.pop %v937
        %v1038 = vmul.f32 1.0, %v1037
        %v1039 = vrcp.pop %v938
        %v1040 = vmul.f32 1.0, %v1039
        %v1041 = vrcp.pop %v939
        %v1042 = vmul.f32 1.0, %v1041
        %v1043 = vrcp.pop %v940
        %v1044 = vmul.f32 1.0, %v1043
        %v1045 = vrcp.pop %v941
        %v1046 = vmul.f32 1.0, %v1045
        %v1047 = vrcp.pop %v942
        %v1048 = vmul.f32 1.0, %v1047
        %v1049 = vrcp.pop %v943
        %v1050 = vmul.f32 1.0, %v1049
        %v1051 = vrcp.pop %v944
        %v1052 = vmul.f32 1.0, %v1051
        %v1053 = vrcp.pop %v945
        %v1054 = vmul.f32 1.0, %v1053
        %v1055 = vrcp.pop %v946
        %v1056 = vmul.f32 1.0, %v1055
        %v1057 = vrcp.pop %v947
        %v1058 = vmul.f32 1.0, %v1057
        %v1059 = vrcp.pop %v948
        %v1060 = vmul.f32 1.0, %v1059
        %v1061 = vrcp.pop %v949
        %v1062 = vmul.f32 1.0, %v1061
        %v1063 = vrcp.pop %v950
        %v1064 = vmul.f32 1.0, %v1063
        %v1065 = vrcp.pop %v951
        %v1066 = vmul.f32 1.0, %v1065
        %v1067 = vrcp.pop %v952
        %v1068 = vmul.f32 1.0, %v1067
        %v1069 = vrcp.pop %v953
        %v1070 = vmul.f32 1.0, %v1069
        %v1071 = vrcp.pop %v954
        %v1072 = vmul.f32 1.0, %v1071
        %v1073 = vrcp.pop %v955
        %v1074 = vmul.f32 1.0, %v1073
        %v1075 = vrcp.pop %v956
        %v1076 = vmul.f32 1.0, %v1075
        %v1077 = vrcp.pop %v957
        %v1078 = vmul.f32 1.0, %v1077
        %v1079 = vrcp.pop %v958
        %v1080 = vmul.f32 1.0, %v1079
        %v1081 = vrcp.pop %v959
        %v1082 = vmul.f32 1.0, %v1081
        %v1083 = vrcp.pop %v960
        %v1084 = vmul.f32 1.0, %v1083
        %v1085 = vrcp.pop %v961
        %v1086 = vmul.f32 1.0, %v1085
        %v1087 = vrcp.pop %v962
        %v1088 = vmul.f32 1.0, %v1087
        %v1089 = vrcp.pop %v963
        %v1090 = vmul.f32 1.0, %v1089
        %v1091 = vrcp.pop %v964
        %v1092 = vmul.f32 1.0, %v1091
        %v1093 = vmul.f32 %v551, %v966
        %v1094 = vmul.f32 %v553, %v968
        %v1095 = vmul.f32 %v555, %v970
        %v1096 = vmul.f32 %v557, %v972
        %v1097 = vmul.f32 %v561, %v974
        %v1098 = vmul.f32 %v563, %v976
        %v1099 = vmul.f32 %v565, %v978
        %v1100 = vmul.f32 %v567, %v980
        %v1101 = vmul.f32 %v571, %v982
        %v1102 = vmul.f32 %v573, %v984
        %v1103 = vmul.f32 %v575, %v986
        %v1104 = vmul.f32 %v577, %v988
        %v1105 = vmul.f32 %v581, %v990
        %v1106 = vmul.f32 %v583, %v992
        %v1107 = vmul.f32 %v585, %v994
        %v1108 = vmul.f32 %v587, %v996
        %v1109 = vmul.f32 %v591, %v998
        %v1110 = vmul.f32 %v593, %v1000
        %v1111 = vmul.f32 %v595, %v1002
        %v1112 = vmul.f32 %v597, %v1004
        %v1113 = vmul.f32 %v601, %v1006
        %v1114 = vmul.f32 %v603, %v1008
        %v1115 = vmul.f32 %v605, %v1010
        %v1116 = vmul.f32 %v607, %v1012
        %v1117 = vmul.f32 %v611, %v1014
        %v1118 = vmul.f32 %v613, %v1016
        %v1119 = vmul.f32 %v615, %v1018
        %v1120 = vmul.f32 %v617, %v1020
        %v1121 = vmul.f32 %v621, %v1022
        %v1122 = vmul.f32 %v623, %v1024
        %v1123 = vmul.f32 %v625, %v1026
        %v1124 = vmul.f32 %v627, %v1028
        %v1125 = vmul.f32 %v631, %v1030
        %v1126 = vmul.f32 %v633, %v1032
        %v1127 = vmul.f32 %v635, %v1034
        %v1128 = vmul.f32 %v637, %v1036
        %v1129 = vmul.f32 %v641, %v1038
        %v1130 = vmul.f32 %v643, %v1040
        %v1131 = vmul.f32 %v645, %v1042
        %v1132 = vmul.f32 %v647, %v1044
        %v1133 = vmul.f32 %v651, %v1046
        %v1134 = vmul.f32 %v653, %v1048
        %v1135 = vmul.f32 %v655, %v1050
        %v1136 = vmul.f32 %v657, %v1052
        %v1137 = vmul.f32 %v661, %v1054
        %v1138 = vmul.f32 %v663, %v1056
        %v1139 = vmul.f32 %v665, %v1058
        %v1140 = vmul.f32 %v667, %v1060
        %v1141 = vmul.f32 %v671, %v1062
        %v1142 = vmul.f32 %v673, %v1064
        %v1143 = vmul.f32 %v675, %v1066
        %v1144 = vmul.f32 %v677, %v1068
        %v1145 = vmul.f32 %v681, %v1070
        %v1146 = vmul.f32 %v683, %v1072
        %v1147 = vmul.f32 %v685, %v1074
        %v1148 = vmul.f32 %v687, %v1076
        %v1149 = vmul.f32 %v691, %v1078
        %v1150 = vmul.f32 %v693, %v1080
        %v1151 = vmul.f32 %v695, %v1082
        %v1152 = vmul.f32 %v697, %v1084
        %v1153 = vmul.f32 %v701, %v1086
        %v1154 = vmul.f32 %v703, %v1088
        %v1155 = vmul.f32 %v705, %v1090
        %v1156 = vmul.f32 %v707, %v1092
        %v1157 = vld [vmem:[#allocation2] sm:$0xff]
        %v1158 = vld [vmem:[#allocation2 + $0x8] sm:$0xff]
        %v1159 = vld [vmem:[#allocation2 + $0x10] sm:$0xff]
        %v1160 = vld [vmem:[#allocation2 + $0x18] sm:$0xff]
        %v1161 = vld [vmem:[#allocation2 + $0x20] sm:$0xff]
        %v1162 = vld [vmem:[#allocation2 + $0x28] sm:$0xff]
        %v1163 = vld [vmem:[#allocation2 + $0x30] sm:$0xff]
        %v1164 = vld [vmem:[#allocation2 + $0x38] sm:$0xff]
        %v1165 = vld [vmem:[#allocation2 + $0x40] sm:$0xff]
        %v1166 = vld [vmem:[#allocation2 + $0x48] sm:$0xff]
        %v1167 = vld [vmem:[#allocation2 + $0x50] sm:$0xff]
        %v1168 = vld [vmem:[#allocation2 + $0x58] sm:$0xff]
        %v1169 = vld [vmem:[#allocation2 + $0x60] sm:$0xff]
        %v1170 = vld [vmem:[#allocation2 + $0x68] sm:$0xff]
        %v1171 = vld [vmem:[#allocation2 + $0x70] sm:$0xff]
        %v1172 = vld [vmem:[#allocation2 + $0x78] sm:$0xff]
        %v1173 = vld [vmem:[#allocation2 + $0x80] sm:$0xff]
        %v1174 = vld [vmem:[#allocation2 + $0x88] sm:$0xff]
        %v1175 = vld [vmem:[#allocation2 + $0x90] sm:$0xff]
        %v1176 = vld [vmem:[#allocation2 + $0x98] sm:$0xff]
        %v1177 = vld [vmem:[#allocation2 + $0xa0] sm:$0xff]
        %v1178 = vld [vmem:[#allocation2 + $0xa8] sm:$0xff]
        %v1179 = vld [vmem:[#allocation2 + $0xb0] sm:$0xff]
        %v1180 = vld [vmem:[#allocation2 + $0xb8] sm:$0xff]
        %v1181 = vld [vmem:[#allocation2 + $0xc0] sm:$0xff]
        %v1182 = vld [vmem:[#allocation2 + $0xc8] sm:$0xff]
        %v1183 = vld [vmem:[#allocation2 + $0xd0] sm:$0xff]
        %v1184 = vld [vmem:[#allocation2 + $0xd8] sm:$0xff]
        %v1185 = vld [vmem:[#allocation2 + $0xe0] sm:$0xff]
        %v1186 = vld [vmem:[#allocation2 + $0xe8] sm:$0xff]
        %v1187 = vld [vmem:[#allocation2 + $0xf0] sm:$0xff]
        %v1188 = vld [vmem:[#allocation2 + $0xf8] sm:$0xff]
        %v1189 = vpack.c.bf16 %v1095, %v1093
        %v1190 = vpack.c.bf16 %v1096, %v1094
        %v1191 = vpack.c.bf16 %v1099, %v1097
        %v1192 = vpack.c.bf16 %v1100, %v1098
        %v1193 = vpack.c.bf16 %v1103, %v1101
        %v1194 = vpack.c.bf16 %v1104, %v1102
        %v1195 = vpack.c.bf16 %v1107, %v1105
        %v1196 = vpack.c.bf16 %v1108, %v1106
        %v1197 = vpack.c.bf16 %v1111, %v1109
        %v1198 = vpack.c.bf16 %v1112, %v1110
        %v1199 = vpack.c.bf16 %v1115, %v1113
        %v1200 = vpack.c.bf16 %v1116, %v1114
        %v1201 = vpack.c.bf16 %v1119, %v1117
        %v1202 = vpack.c.bf16 %v1120, %v1118
        %v1203 = vpack.c.bf16 %v1123, %v1121
        %v1204 = vpack.c.bf16 %v1124, %v1122
        %v1205 = vpack.c.bf16 %v1127, %v1125
        %v1206 = vpack.c.bf16 %v1128, %v1126
        %v1207 = vpack.c.bf16 %v1131, %v1129
        %v1208 = vpack.c.bf16 %v1132, %v1130
        %v1209 = vpack.c.bf16 %v1135, %v1133
        %v1210 = vpack.c.bf16 %v1136, %v1134
        %v1211 = vpack.c.bf16 %v1139, %v1137
        %v1212 = vpack.c.bf16 %v1140, %v1138
        %v1213 = vpack.c.bf16 %v1143, %v1141
        %v1214 = vpack.c.bf16 %v1144, %v1142
        %v1215 = vpack.c.bf16 %v1147, %v1145
        %v1216 = vpack.c.bf16 %v1148, %v1146
        %v1217 = vpack.c.bf16 %v1151, %v1149
        %v1218 = vpack.c.bf16 %v1152, %v1150
        %v1219 = vpack.c.bf16 %v1155, %v1153
        %v1220 = vpack.c.bf16 %v1156, %v1154
        %v1221 = vld [vmem:[#allocation8] sm:$0xf]
        %v1222 = vld [vmem:[#allocation8 + $0x4] sm:$0xf]
        %v1223 = vld [vmem:[#allocation8 + $0x8] sm:$0xf]
        %v1224 = vld [vmem:[#allocation8 + $0xc] sm:$0xf]
        %v1225 = vld [vmem:[#allocation8 + $0x10] sm:$0xf]
        %v1226 = vld [vmem:[#allocation8 + $0x14] sm:$0xf]
        %v1227 = vld [vmem:[#allocation8 + $0x18] sm:$0xf]
        %v1228 = vld [vmem:[#allocation8 + $0x1c] sm:$0xf]
        %v1229 = vld [vmem:[#allocation8 + $0x20] sm:$0xf]
        %v1230 = vld [vmem:[#allocation8 + $0x24] sm:$0xf]
        %v1231 = vld [vmem:[#allocation8 + $0x28] sm:$0xf]
        %v1232 = vld [vmem:[#allocation8 + $0x2c] sm:$0xf]
        %v1233 = vld [vmem:[#allocation8 + $0x30] sm:$0xf]
        %v1234 = vld [vmem:[#allocation8 + $0x34] sm:$0xf]
        %v1235 = vld [vmem:[#allocation8 + $0x38] sm:$0xf]
        %v1236 = vld [vmem:[#allocation8 + $0x3c] sm:$0xf]
        %v1237 = vld [vmem:[#allocation8 + $0x40] sm:$0xf]
        %v1238 = vld [vmem:[#allocation8 + $0x44] sm:$0xf]
        %v1239 = vld [vmem:[#allocation8 + $0x48] sm:$0xf]
        %v1240 = vld [vmem:[#allocation8 + $0x4c] sm:$0xf]
        %v1241 = vld [vmem:[#allocation8 + $0x50] sm:$0xf]
        %v1242 = vld [vmem:[#allocation8 + $0x54] sm:$0xf]
        %v1243 = vld [vmem:[#allocation8 + $0x58] sm:$0xf]
        %v1244 = vld [vmem:[#allocation8 + $0x5c] sm:$0xf]
        %v1245 = vld [vmem:[#allocation8 + $0x60] sm:$0xf]
        %v1246 = vld [vmem:[#allocation8 + $0x64] sm:$0xf]
        %v1247 = vld [vmem:[#allocation8 + $0x68] sm:$0xf]
        %v1248 = vld [vmem:[#allocation8 + $0x6c] sm:$0xf]
        %v1249 = vld [vmem:[#allocation8 + $0x70] sm:$0xf]
        %v1250 = vld [vmem:[#allocation8 + $0x74] sm:$0xf]
        %v1251 = vld [vmem:[#allocation8 + $0x78] sm:$0xf]
        %v1252 = vld [vmem:[#allocation8 + $0x7c] sm:$0xf]
        %v1285 = vunpack.c.l.b16 %v1221
        %v1286 = vunpack.c.l.b16 %v1222
        %v1287 = vunpack.c.l.b16 %v1223
        %v1288 = vunpack.c.l.b16 %v1224
        %v1289 = vunpack.c.l.b16 %v1225
        %v1290 = vunpack.c.l.b16 %v1226
        %v1291 = vunpack.c.l.b16 %v1227
        %v1292 = vunpack.c.l.b16 %v1228
        %v1293 = vunpack.c.l.b16 %v1229
        %v1294 = vunpack.c.l.b16 %v1230
        %v1295 = vunpack.c.l.b16 %v1231
        %v1296 = vunpack.c.l.b16 %v1232
        %v1297 = vunpack.c.l.b16 %v1233
        %v1298 = vunpack.c.l.b16 %v1234
        %v1299 = vunpack.c.l.b16 %v1235
        %v1300 = vunpack.c.l.b16 %v1236
        %v1301 = vunpack.c.l.b16 %v1237
        %v1302 = vunpack.c.l.b16 %v1238
        %v1303 = vunpack.c.l.b16 %v1239
        %v1304 = vunpack.c.l.b16 %v1240
        %v1305 = vunpack.c.l.b16 %v1241
        %v1306 = vunpack.c.l.b16 %v1242
        %v1307 = vunpack.c.l.b16 %v1243
        %v1308 = vunpack.c.l.b16 %v1244
        %v1309 = vunpack.c.l.b16 %v1245
        %v1310 = vunpack.c.l.b16 %v1246
        %v1311 = vunpack.c.l.b16 %v1247
        %v1312 = vunpack.c.l.b16 %v1248
        %v1313 = vunpack.c.l.b16 %v1249
        %v1314 = vunpack.c.l.b16 %v1250
        %v1315 = vunpack.c.l.b16 %v1251
        %v1316 = vunpack.c.l.b16 %v1252
        %v1317 = vpack.c.b16 %v1286, %v1285
        %v1318 = vpack.c.b16 %v1288, %v1287
        %v1319 = vpack.c.b16 %v1290, %v1289
        %v1320 = vpack.c.b16 %v1292, %v1291
        %v1321 = vpack.c.b16 %v1294, %v1293
        %v1322 = vpack.c.b16 %v1296, %v1295
        %v1323 = vpack.c.b16 %v1298, %v1297
        %v1324 = vpack.c.b16 %v1300, %v1299
        %v1325 = vpack.c.b16 %v1302, %v1301
        %v1326 = vpack.c.b16 %v1304, %v1303
        %v1327 = vpack.c.b16 %v1306, %v1305
        %v1328 = vpack.c.b16 %v1308, %v1307
        %v1329 = vpack.c.b16 %v1310, %v1309
        %v1330 = vpack.c.b16 %v1312, %v1311
        %v1331 = vpack.c.b16 %v1314, %v1313
        %v1332 = vpack.c.b16 %v1316, %v1315
        %1349 = vmatprep.subr.bf16.mxu0 0
        %1350 = vmatpush1.bf16.msra.mxu0 %v1324
        %1351 = vmatprep.subr.bf16.mxu0 0
        %1352 = vmatpush1.bf16.msra.mxu0 %v1323
        %1353 = vmatprep.subr.bf16.mxu0 0
        %1354 = vmatpush1.bf16.msra.mxu0 %v1322
        %1355 = vmatprep.subr.bf16.mxu0 0
        %1356 = vmatpush1.bf16.msra.mxu0 %v1321
        %1357 = vmatprep.subr.bf16.mxu0 0
        %1358 = vmatpush1.bf16.msra.mxu0 %v1320
        %1359 = vmatprep.subr.bf16.mxu0 0
        %1360 = vmatpush1.bf16.msra.mxu0 %v1319
        %1361 = vmatprep.subr.bf16.mxu0 0
        %1362 = vmatpush1.bf16.msra.mxu0 %v1318
        %1363 = vmatprep.subr.bf16.mxu0 0
        %1364 = vmatpush1.bf16.msra.mxu0 %v1317
        %1365 = vmatprep.subr.bf16.mxu0 0
        %1366 = vmatpush2.bf16.msra.mxu0 %v1332
        %1367 = vmatprep.subr.bf16.mxu0 0
        %1368 = vmatpush2.bf16.msra.mxu0 %v1331
        %1369 = vmatprep.subr.bf16.mxu0 0
        %1370 = vmatpush2.bf16.msra.mxu0 %v1330
        %1371 = vmatprep.subr.bf16.mxu0 0
        %1372 = vmatpush2.bf16.msra.mxu0 %v1329
        %1373 = vmatprep.subr.bf16.mxu0 0
        %1374 = vmatpush2.bf16.msra.mxu0 %v1328
        %1375 = vmatprep.subr.bf16.mxu0 0
        %1376 = vmatpush2.bf16.msra.mxu0 %v1327
        %1377 = vmatprep.subr.bf16.mxu0 0
        %1378 = vmatpush2.bf16.msra.mxu0 %v1326
        %1379 = vmatprep.subr.bf16.mxu0 0
        %1380 = vmatpush2.bf16.msra.mxu0 %v1325
        %1381 = vmatprep.mubr.bf16.mxu0 %v1190
        %1382 = vmatmul.mubr.bf16.gmra.mxu0 %v1189
        %v1383 = vpop.f32.mrf.mxu0
        %v1384 = vadd.f32 0.0, %v1383
        %v1385 = vpop.f32.mrf.mxu0
        %v1386 = vpop.f32.mrf.mxu0
        %v1387 = vadd.f32 0.0, %v1386
        %v1388 = vpop.f32.mrf.mxu0
        %1389 = vmatprep.mubr.bf16.mxu0 %v1192
        %1390 = vmatmul.mubr.bf16.gmra.mxu0 %v1191
        %v1391 = vpop.f32.mrf.mxu0
        %v1392 = vadd.f32 0.0, %v1391
        %v1393 = vpop.f32.mrf.mxu0
        %v1394 = vpop.f32.mrf.mxu0
        %v1395 = vadd.f32 0.0, %v1394
        %v1396 = vpop.f32.mrf.mxu0
        %1397 = vmatprep.mubr.bf16.mxu0 %v1194
        %1398 = vmatmul.mubr.bf16.gmra.mxu0 %v1193
        %v1399 = vpop.f32.mrf.mxu0
        %v1400 = vadd.f32 0.0, %v1399
        %v1401 = vpop.f32.mrf.mxu0
        %v1402 = vpop.f32.mrf.mxu0
        %v1403 = vadd.f32 0.0, %v1402
        %v1404 = vpop.f32.mrf.mxu0
        %1405 = vmatprep.mubr.bf16.mxu0 %v1196
        %1406 = vmatmul.mubr.bf16.gmra.mxu0 %v1195
        %v1407 = vpop.f32.mrf.mxu0
        %v1408 = vadd.f32 0.0, %v1407
        %v1409 = vpop.f32.mrf.mxu0
        %v1410 = vpop.f32.mrf.mxu0
        %v1411 = vadd.f32 0.0, %v1410
        %v1412 = vpop.f32.mrf.mxu0
        %1413 = vmatprep.mubr.bf16.mxu0 %v1198
        %1414 = vmatmul.mubr.bf16.gmra.mxu0 %v1197
        %v1415 = vpop.f32.mrf.mxu0
        %v1416 = vadd.f32 0.0, %v1415
        %v1417 = vpop.f32.mrf.mxu0
        %v1418 = vpop.f32.mrf.mxu0
        %v1419 = vadd.f32 0.0, %v1418
        %v1420 = vpop.f32.mrf.mxu0
        %1421 = vmatprep.mubr.bf16.mxu0 %v1200
        %1422 = vmatmul.mubr.bf16.gmra.mxu0 %v1199
        %v1423 = vpop.f32.mrf.mxu0
        %v1424 = vadd.f32 0.0, %v1423
        %v1425 = vpop.f32.mrf.mxu0
        %v1426 = vpop.f32.mrf.mxu0
        %v1427 = vadd.f32 0.0, %v1426
        %v1428 = vpop.f32.mrf.mxu0
        %1429 = vmatprep.mubr.bf16.mxu0 %v1202
        %1430 = vmatmul.mubr.bf16.gmra.mxu0 %v1201
        %v1431 = vpop.f32.mrf.mxu0
        %v1432 = vadd.f32 0.0, %v1431
        %v1433 = vpop.f32.mrf.mxu0
        %v1434 = vpop.f32.mrf.mxu0
        %v1435 = vadd.f32 0.0, %v1434
        %v1436 = vpop.f32.mrf.mxu0
        %1437 = vmatprep.mubr.bf16.mxu0 %v1204
        %1438 = vmatmul.mubr.bf16.gmra.mxu0 %v1203
        %v1439 = vpop.f32.mrf.mxu0
        %v1440 = vadd.f32 0.0, %v1439
        %v1441 = vpop.f32.mrf.mxu0
        %v1442 = vpop.f32.mrf.mxu0
        %v1443 = vadd.f32 0.0, %v1442
        %v1444 = vpop.f32.mrf.mxu0
        %1445 = vmatprep.mubr.bf16.mxu0 %v1206
        %1446 = vmatmul.mubr.bf16.gmra.mxu0 %v1205
        %v1447 = vpop.f32.mrf.mxu0
        %v1448 = vadd.f32 0.0, %v1447
        %v1449 = vpop.f32.mrf.mxu0
        %v1450 = vpop.f32.mrf.mxu0
        %v1451 = vadd.f32 0.0, %v1450
        %v1452 = vpop.f32.mrf.mxu0
        %1453 = vmatprep.mubr.bf16.mxu0 %v1208
        %1454 = vmatmul.mubr.bf16.gmra.mxu0 %v1207
        %v1455 = vpop.f32.mrf.mxu0
        %v1456 = vadd.f32 0.0, %v1455
        %v1457 = vpop.f32.mrf.mxu0
        %v1458 = vpop.f32.mrf.mxu0
        %v1459 = vadd.f32 0.0, %v1458
        %v1460 = vpop.f32.mrf.mxu0
        %1461 = vmatprep.mubr.bf16.mxu0 %v1210
        %1462 = vmatmul.mubr.bf16.gmra.mxu0 %v1209
        %v1463 = vpop.f32.mrf.mxu0
        %v1464 = vadd.f32 0.0, %v1463
        %v1465 = vpop.f32.mrf.mxu0
        %v1466 = vpop.f32.mrf.mxu0
        %v1467 = vadd.f32 0.0, %v1466
        %v1468 = vpop.f32.mrf.mxu0
        %1469 = vmatprep.mubr.bf16.mxu0 %v1212
        %1470 = vmatmul.mubr.bf16.gmra.mxu0 %v1211
        %v1471 = vpop.f32.mrf.mxu0
        %v1472 = vadd.f32 0.0, %v1471
        %v1473 = vpop.f32.mrf.mxu0
        %v1474 = vpop.f32.mrf.mxu0
        %v1475 = vadd.f32 0.0, %v1474
        %v1476 = vpop.f32.mrf.mxu0
        %1477 = vmatprep.mubr.bf16.mxu0 %v1214
        %1478 = vmatmul.mubr.bf16.gmra.mxu0 %v1213
        %v1479 = vpop.f32.mrf.mxu0
        %v1480 = vadd.f32 0.0, %v1479
        %v1481 = vpop.f32.mrf.mxu0
        %v1482 = vpop.f32.mrf.mxu0
        %v1483 = vadd.f32 0.0, %v1482
        %v1484 = vpop.f32.mrf.mxu0
        %1485 = vmatprep.mubr.bf16.mxu0 %v1216
        %1486 = vmatmul.mubr.bf16.gmra.mxu0 %v1215
        %v1487 = vpop.f32.mrf.mxu0
        %v1488 = vadd.f32 0.0, %v1487
        %v1489 = vpop.f32.mrf.mxu0
        %v1490 = vpop.f32.mrf.mxu0
        %v1491 = vadd.f32 0.0, %v1490
        %v1492 = vpop.f32.mrf.mxu0
        %1493 = vmatprep.mubr.bf16.mxu0 %v1218
        %1494 = vmatmul.mubr.bf16.gmra.mxu0 %v1217
        %v1495 = vpop.f32.mrf.mxu0
        %v1496 = vadd.f32 0.0, %v1495
        %v1497 = vpop.f32.mrf.mxu0
        %v1498 = vpop.f32.mrf.mxu0
        %v1499 = vadd.f32 0.0, %v1498
        %v1500 = vpop.f32.mrf.mxu0
        %1501 = vmatprep.mubr.bf16.mxu0 %v1220
        %1502 = vmatmul.mubr.bf16.gmra.mxu0 %v1219
        %v1503 = vpop.f32.mrf.mxu0
        %v1504 = vadd.f32 0.0, %v1503
        %v1505 = vpop.f32.mrf.mxu0
        %v1506 = vpop.f32.mrf.mxu0
        %v1507 = vadd.f32 0.0, %v1506
        %v1508 = vpop.f32.mrf.mxu0
        %1509 = vdwg.mxu0
        %v1510 = vadd.f32 %v1157, %v1384
        %v1511 = vadd.f32 %v1158, %v1387
        %v1512 = vadd.f32 %v1159, %v1392
        %v1513 = vadd.f32 %v1160, %v1395
        %v1514 = vadd.f32 %v1161, %v1400
        %v1515 = vadd.f32 %v1162, %v1403
        %v1516 = vadd.f32 %v1163, %v1408
        %v1517 = vadd.f32 %v1164, %v1411
        %v1518 = vadd.f32 %v1165, %v1416
        %v1519 = vadd.f32 %v1166, %v1419
        %v1520 = vadd.f32 %v1167, %v1424
        %v1521 = vadd.f32 %v1168, %v1427
        %v1522 = vadd.f32 %v1169, %v1432
        %v1523 = vadd.f32 %v1170, %v1435
        %v1524 = vadd.f32 %v1171, %v1440
        %v1525 = vadd.f32 %v1172, %v1443
        %v1526 = vadd.f32 %v1173, %v1448
        %v1527 = vadd.f32 %v1174, %v1451
        %v1528 = vadd.f32 %v1175, %v1456
        %v1529 = vadd.f32 %v1176, %v1459
        %v1530 = vadd.f32 %v1177, %v1464
        %v1531 = vadd.f32 %v1178, %v1467
        %v1532 = vadd.f32 %v1179, %v1472
        %v1533 = vadd.f32 %v1180, %v1475
        %v1534 = vadd.f32 %v1181, %v1480
        %v1535 = vadd.f32 %v1182, %v1483
        %v1536 = vadd.f32 %v1183, %v1488
        %v1537 = vadd.f32 %v1184, %v1491
        %v1538 = vadd.f32 %v1185, %v1496
        %v1539 = vadd.f32 %v1186, %v1499
        %v1540 = vadd.f32 %v1187, %v1504
        %v1541 = vadd.f32 %v1188, %v1507
        %1542 = vst [vmem:[#allocation2] sm:$0xff] %v1510
        %1543 = vst [vmem:[#allocation2 + $0x8] sm:$0xff] %v1511
        %1544 = vst [vmem:[#allocation2 + $0x10] sm:$0xff] %v1512
        %1545 = vst [vmem:[#allocation2 + $0x18] sm:$0xff] %v1513
        %1546 = vst [vmem:[#allocation2 + $0x20] sm:$0xff] %v1514
        %1547 = vst [vmem:[#allocation2 + $0x28] sm:$0xff] %v1515
        %1548 = vst [vmem:[#allocation2 + $0x30] sm:$0xff] %v1516
        %1549 = vst [vmem:[#allocation2 + $0x38] sm:$0xff] %v1517
        %1550 = vst [vmem:[#allocation2 + $0x40] sm:$0xff] %v1518
        %1551 = vst [vmem:[#allocation2 + $0x48] sm:$0xff] %v1519
        %1552 = vst [vmem:[#allocation2 + $0x50] sm:$0xff] %v1520
        %1553 = vst [vmem:[#allocation2 + $0x58] sm:$0xff] %v1521
        %1554 = vst [vmem:[#allocation2 + $0x60] sm:$0xff] %v1522
        %1555 = vst [vmem:[#allocation2 + $0x68] sm:$0xff] %v1523
        %1556 = vst [vmem:[#allocation2 + $0x70] sm:$0xff] %v1524
        %1557 = vst [vmem:[#allocation2 + $0x78] sm:$0xff] %v1525
        %1558 = vst [vmem:[#allocation2 + $0x80] sm:$0xff] %v1526
        %1559 = vst [vmem:[#allocation2 + $0x88] sm:$0xff] %v1527
        %1560 = vst [vmem:[#allocation2 + $0x90] sm:$0xff] %v1528
        %1561 = vst [vmem:[#allocation2 + $0x98] sm:$0xff] %v1529
        %1562 = vst [vmem:[#allocation2 + $0xa0] sm:$0xff] %v1530
        %1563 = vst [vmem:[#allocation2 + $0xa8] sm:$0xff] %v1531
        %1564 = vst [vmem:[#allocation2 + $0xb0] sm:$0xff] %v1532
        %1565 = vst [vmem:[#allocation2 + $0xb8] sm:$0xff] %v1533
        %1566 = vst [vmem:[#allocation2 + $0xc0] sm:$0xff] %v1534
        %1567 = vst [vmem:[#allocation2 + $0xc8] sm:$0xff] %v1535
        %1568 = vst [vmem:[#allocation2 + $0xd0] sm:$0xff] %v1536
        %1569 = vst [vmem:[#allocation2 + $0xd8] sm:$0xff] %v1537
        %1570 = vst [vmem:[#allocation2 + $0xe0] sm:$0xff] %v1538
        %1571 = vst [vmem:[#allocation2 + $0xe8] sm:$0xff] %v1539
        %1572 = vst [vmem:[#allocation2 + $0xf0] sm:$0xff] %v1540
        %1573 = vst [vmem:[#allocation2 + $0xf8] sm:$0xff] %v1541
        // Predicated region
        $region57: #{tpu_custom_call.1} parent=39 // pred_check
          %p1574 = pneg %p324
        $region58: #{tpu_custom_call.1} parent=39 // pred_check_branch
          %1576 = sbr.rel (%p1574) target = $region60
        $region59: #{tpu_custom_call.1} parent=39 // pred_region
          %v1577 = vld [vmem:[#allocation2] sm:$0xff]
          %v1578 = vld [vmem:[#allocation2 + $0x8] sm:$0xff]
          %v1579 = vld [vmem:[#allocation2 + $0x10] sm:$0xff]
          %v1580 = vld [vmem:[#allocation2 + $0x18] sm:$0xff]
          %v1581 = vld [vmem:[#allocation2 + $0x20] sm:$0xff]
          %v1582 = vld [vmem:[#allocation2 + $0x28] sm:$0xff]
          %v1583 = vld [vmem:[#allocation2 + $0x30] sm:$0xff]
          %v1584 = vld [vmem:[#allocation2 + $0x38] sm:$0xff]
          %v1585 = vld [vmem:[#allocation2 + $0x40] sm:$0xff]
          %v1586 = vld [vmem:[#allocation2 + $0x48] sm:$0xff]
          %v1587 = vld [vmem:[#allocation2 + $0x50] sm:$0xff]
          %v1588 = vld [vmem:[#allocation2 + $0x58] sm:$0xff]
          %v1589 = vld [vmem:[#allocation2 + $0x60] sm:$0xff]
          %v1590 = vld [vmem:[#allocation2 + $0x68] sm:$0xff]
          %v1591 = vld [vmem:[#allocation2 + $0x70] sm:$0xff]
          %v1592 = vld [vmem:[#allocation2 + $0x78] sm:$0xff]
          %v1593 = vld [vmem:[#allocation2 + $0x80] sm:$0xff]
          %v1594 = vld [vmem:[#allocation2 + $0x88] sm:$0xff]
          %v1595 = vld [vmem:[#allocation2 + $0x90] sm:$0xff]
          %v1596 = vld [vmem:[#allocation2 + $0x98] sm:$0xff]
          %v1597 = vld [vmem:[#allocation2 + $0xa0] sm:$0xff]
          %v1598 = vld [vmem:[#allocation2 + $0xa8] sm:$0xff]
          %v1599 = vld [vmem:[#allocation2 + $0xb0] sm:$0xff]
          %v1600 = vld [vmem:[#allocation2 + $0xb8] sm:$0xff]
          %v1601 = vld [vmem:[#allocation2 + $0xc0] sm:$0xff]
          %v1602 = vld [vmem:[#allocation2 + $0xc8] sm:$0xff]
          %v1603 = vld [vmem:[#allocation2 + $0xd0] sm:$0xff]
          %v1604 = vld [vmem:[#allocation2 + $0xd8] sm:$0xff]
          %v1605 = vld [vmem:[#allocation2 + $0xe0] sm:$0xff]
          %v1606 = vld [vmem:[#allocation2 + $0xe8] sm:$0xff]
          %v1607 = vld [vmem:[#allocation2 + $0xf0] sm:$0xff]
          %v1608 = vld [vmem:[#allocation2 + $0xf8] sm:$0xff]
          %v1609 = vld [vmem:[%s4] sm:$0x1]
          %v1611 = vlaneseq
          %v1612 = vshrl.u32 %v1611, 7
          %v1613 = vsub.s32 0, %v1612
          %v1614 = vrot.slane %v1609, %v1613
          %v1616 = vadd.f32 %v1577, %v1614
          %v1617 = vadd.f32 %v1578, %v1614
          %v1618 = vadd.f32 %v1579, %v1614
          %v1619 = vadd.f32 %v1580, %v1614
          %v1620 = vadd.f32 %v1581, %v1614
          %v1621 = vadd.f32 %v1582, %v1614
          %v1622 = vadd.f32 %v1583, %v1614
          %v1623 = vadd.f32 %v1584, %v1614
          %v1624 = vadd.f32 %v1585, %v1614
          %v1625 = vadd.f32 %v1586, %v1614
          %v1626 = vadd.f32 %v1587, %v1614
          %v1627 = vadd.f32 %v1588, %v1614
          %v1628 = vadd.f32 %v1589, %v1614
          %v1629 = vadd.f32 %v1590, %v1614
          %v1630 = vadd.f32 %v1591, %v1614
          %v1631 = vadd.f32 %v1592, %v1614
          %v1632 = vadd.f32 %v1593, %v1614
          %v1633 = vadd.f32 %v1594, %v1614
          %v1634 = vadd.f32 %v1595, %v1614
          %v1635 = vadd.f32 %v1596, %v1614
          %v1636 = vadd.f32 %v1597, %v1614
          %v1637 = vadd.f32 %v1598, %v1614
          %v1638 = vadd.f32 %v1599, %v1614
          %v1639 = vadd.f32 %v1600, %v1614
          %v1640 = vadd.f32 %v1601, %v1614
          %v1641 = vadd.f32 %v1602, %v1614
          %v1642 = vadd.f32 %v1603, %v1614
          %v1643 = vadd.f32 %v1604, %v1614
          %v1644 = vadd.f32 %v1605, %v1614
          %v1645 = vadd.f32 %v1606, %v1614
          %v1646 = vadd.f32 %v1607, %v1614
          %v1647 = vadd.f32 %v1608, %v1614
          %1648 = vst [vmem:[%s313] sm:$0xff] %v1616
          %1649 = vst [vmem:[%s313 + $0x8] sm:$0xff] %v1617
          %1650 = vst [vmem:[%s313 + $0x10] sm:$0xff] %v1618
          %1651 = vst [vmem:[%s313 + $0x18] sm:$0xff] %v1619
          %1652 = vst [vmem:[%s313 + $0x20] sm:$0xff] %v1620
          %1653 = vst [vmem:[%s313 + $0x28] sm:$0xff] %v1621
          %1654 = vst [vmem:[%s313 + $0x30] sm:$0xff] %v1622
          %1655 = vst [vmem:[%s313 + $0x38] sm:$0xff] %v1623
          %1656 = vst [vmem:[%s313 + $0x40] sm:$0xff] %v1624
          %1657 = vst [vmem:[%s313 + $0x48] sm:$0xff] %v1625
          %1658 = vst [vmem:[%s313 + $0x50] sm:$0xff] %v1626
          %1659 = vst [vmem:[%s313 + $0x58] sm:$0xff] %v1627
          %1660 = vst [vmem:[%s313 + $0x60] sm:$0xff] %v1628
          %1661 = vst [vmem:[%s313 + $0x68] sm:$0xff] %v1629
          %1662 = vst [vmem:[%s313 + $0x70] sm:$0xff] %v1630
          %1663 = vst [vmem:[%s313 + $0x78] sm:$0xff] %v1631
          %1664 = vst [vmem:[%s313 + $0x80] sm:$0xff] %v1632
          %1665 = vst [vmem:[%s313 + $0x88] sm:$0xff] %v1633
          %1666 = vst [vmem:[%s313 + $0x90] sm:$0xff] %v1634
          %1667 = vst [vmem:[%s313 + $0x98] sm:$0xff] %v1635
          %1668 = vst [vmem:[%s313 + $0xa0] sm:$0xff] %v1636
          %1669 = vst [vmem:[%s313 + $0xa8] sm:$0xff] %v1637
          %1670 = vst [vmem:[%s313 + $0xb0] sm:$0xff] %v1638
          %1671 = vst [vmem:[%s313 + $0xb8] sm:$0xff] %v1639
          %1672 = vst [vmem:[%s313 + $0xc0] sm:$0xff] %v1640
          %1673 = vst [vmem:[%s313 + $0xc8] sm:$0xff] %v1641
          %1674 = vst [vmem:[%s313 + $0xd0] sm:$0xff] %v1642
          %1675 = vst [vmem:[%s313 + $0xd8] sm:$0xff] %v1643
          %1676 = vst [vmem:[%s313 + $0xe0] sm:$0xff] %v1644
          %1677 = vst [vmem:[%s313 + $0xe8] sm:$0xff] %v1645
          %1678 = vst [vmem:[%s313 + $0xf0] sm:$0xff] %v1646
          %1679 = vst [vmem:[%s313 + $0xf8] sm:$0xff] %v1647
        $region60: #{tpu_custom_call.1} parent=39 // pred_fallthru
          _
        %s1680 = sand.u32 %s168, 1
        %s1681 = scalar_lea.sflag [#allocation5], %s1680
        %s1682 = sand.u32 %s168, 1
        %s1683 = smul.addr %s1682, 256
        %s1684 = scalar_lea.vmem [#allocation9], %s1683
        // Predicated region
        $region61: #{tpu_custom_call.1} parent=39 // pred_check
          %p1685 = pneg %p178
        $region62: #{tpu_custom_call.1} parent=39 // pred_check_branch
          %1687 = sbr.rel (%p1685) target = $region64
        $region63: #{tpu_custom_call.1} parent=39 // pred_region
          %s1688 = smul.u32 32, %s27
          %s1690 = ssub.s32 4096, 4096
          %1691 = vsyncadd %s1681, %s1690
          %s1692 = smul.addr %s1688, 128
          %s1693 = scalar_lea.hbm %s5, %s1692
          %s1694 = sshll.u32 %s1684, 4
          %s1695 = int_to_ptr.vmem [resolvable:$true] %s1694
          %1700 = dma.vmem_to_hbm [thread:$0]  %s1695, 4096, %s1693, %s1681, 128, 128, 8
        $region64: #{tpu_custom_call.1} parent=39 // pred_fallthru
          _
      $region40: #{tpu_custom_call.1} parent=5 // pred_fallthru
        _
      %p1701 = scmp.le.s32.totalorder 2, %s18
      // Predicated region
      $region65: #{tpu_custom_call.1} parent=5 // pred_check
        %p1702 = pneg %p1701
      $region66: #{tpu_custom_call.1} parent=5 // pred_check_branch
        %1704 = sbr.rel (%p1702) target = $region68
      $region67: #{tpu_custom_call.1} parent=5 // pred_region
        %s1705 = ssub.s32 %s18, 2
        // Predicated region
        $region69: #{tpu_custom_call.1} parent=67 // pred_check
          %p1706 = pneg %p184
        $region70: #{tpu_custom_call.1} parent=67 // pred_check_branch
          %1708 = sbr.rel (%p1706) target = $region72
        $region71: #{tpu_custom_call.1} parent=67 // pred_region
          %s1709 = sand.u32 %s169, 1
          %s1710 = scalar_lea.sflag [#allocation5], %s1709
          %s1711 = sand.u32 %s169, 1
          %s1712 = smul.addr %s1711, 256
          %s1713 = scalar_lea.vmem [#allocation9], %s1712
          %1714 = dma.done %s1710, 4096
        $region72: #{tpu_custom_call.1} parent=67 // pred_fallthru
          _
      $region68: #{tpu_custom_call.1} parent=5 // pred_fallthru
        _
    $region6: #{tpu_custom_call.1} parent=1 // loop_footer
      %s22 = sadd.s32 1, %s18
    $region7: #{tpu_custom_call.1} parent=1 // loop_footer_branch
      %17 = sbr.rel target = $region3
    $region8: #{tpu_custom_call.1} parent=1 // loop_exit
      _
    %1715 = vsyncpa [#allocation4], 1
    %s1716 = scalar_lea.sflag [#allocation4], 1
    %1717 = vsyncpa %s1716, 1
    %1718 = vsyncpa [#allocation7], 1
    %1719 = vsyncpa [#allocation5], 1
    %s1720 = scalar_lea.sflag [#allocation5], 1
    %1721 = vsyncpa %s1720, 1

</llo_original>
